<compile_context>
chip_gen: v5e
topology: v5e:2x2
jax: 0.10.0
libtpu: 0.0.40
codegen_flags: <defaults>
</compile_context>

<pallas_src>
import functools

import jax
import jax.numpy as jnp
import numpy as np
from jax import lax
from jax.experimental import pallas as pl
from jax.experimental.pallas import tpu as pltpu

_EPS = 1e-5
_MXU_DTYPE = jnp.bfloat16          # matmul operand dtype (accumulation is f32)
_VMEM_LIMIT = 32 * 1024 * 1024     # safe scoped-VMEM cap on v5e / v6e / v7x


# ---------------------------------------------------------------------------
# kernels — all work on lane-dense (C, TM) tiles, TM = images_per_tile * HWp
# ---------------------------------------------------------------------------
def _write_stats(st_ref, val, pix):
    """Per-channel partial (sum, sum_of_squares) over valid lanes -> (C, 2)."""
    vm = val * pix                                    # zero out padded pixels
    st_ref[:, 0:1] = jnp.sum(vm, axis=1, keepdims=True)
    st_ref[:, 1:2] = jnp.sum(vm * val, axis=1, keepdims=True)


def _pass1_kernel(use_branch, x_ref, pix_ref, w2a_ref, b2a_ref, *rest):
    """branch1 1x1 conv (optional) + branch2 stage-a 1x1 conv + stage-a stats."""
    if use_branch:
        w1_ref, b1_ref, br1_ref, m1_ref, sta_ref = rest
    else:
        m1_ref, sta_ref = rest
    x = x_ref[...]                                               # (Cin, TM) bf16
    m1p = jnp.dot(w2a_ref[...], x,
                  preferred_element_type=jnp.float32) + b2a_ref[...]
    m1_ref[...] = m1p
    _write_stats(sta_ref, m1p, pix_ref[...])
    if use_branch:
        br1_ref[...] = jnp.dot(w1_ref[...], x,
                               preferred_element_type=jnp.float32) + b1_ref[...]


def _pass2_kernel(Wo, m1_ref, pix_ref, tap_ref, sc_ref, sh_ref, w_ref, b_ref,
                  acc_ref, stb_ref):
    """BN-a + ReLU, 3x3 conv (stride 1, pad 1) as one fused matmul, stage-b stats."""
    tm = m1_ref.shape[-1]
    m1 = jnp.maximum(sc_ref[...] * m1_ref[...] + sh_ref[...], 0.0)      # f32
    tap = tap_ref[...]                                                  # (9, TM)
    pieces = []
    for kh in range(3):
        for kw in range(3):
            t = kh * 3 + kw
            s = (kh - 1) * Wo + (kw - 1)         # out[:, m] needs in[:, m + s]
            shifted = m1 if s == 0 else pltpu.roll(m1, (-s) % tm, axis=1)
            # roll wraps around; the tap mask zeroes every wrapped /
            # out-of-image neighbour read, reproducing zero padding.
            pieces.append(shifted * tap[t:t + 1, :])
    stacked = jnp.concatenate(pieces, axis=0).astype(_MXU_DTYPE)   # (9*C4, TM)
    acc = jnp.dot(w_ref[...], stacked,
                  preferred_element_type=jnp.float32) + b_ref[...]
    acc_ref[...] = acc
    _write_stats(stb_ref, acc, pix_ref[...])


def _pass3_kernel(acc_ref, pix_ref, sc_ref, sh_ref, w_ref, b_ref,
                  m3_ref, stc_ref):
    """BN-b + ReLU, stage-c 1x1 conv, stage-c stats."""
    m2 = jnp.maximum(sc_ref[...] * acc_ref[...] + sh_ref[...], 0.0)
    m3p = jnp.dot(w_ref[...], m2.astype(_MXU_DTYPE),
                  preferred_element_type=jnp.float32) + b_ref[...]
    m3_ref[...] = m3p
    _write_stats(stc_ref, m3p, pix_ref[...])


def _pass4_kernel(m3_ref, br1_ref, sc_ref, sh_ref, out_ref):
    """BN-c + residual add + final ReLU."""
    out_ref[...] = jnp.maximum(
        sc_ref[...] * m3_ref[...] + sh_ref[...]
        + br1_ref[...].astype(jnp.float32), 0.0)


# ---------------------------------------------------------------------------
# wrapper helpers (glue only: layout, masks, BN finalize)
# ---------------------------------------------------------------------------
def _round_up(x, m):
    return (x + m - 1) // m * m


def _images_per_tile(n, hwp, target_lanes):
    best = 1
    for nb in range(1, n + 1):
        if n % nb == 0 and nb * hwp <= max(target_lanes, hwp):
            best = nb
    return best


def _build_masks(Ho, Wo, HWp, nb):
    """Per-tile pixel-valid mask (1, TM) and 9 tap border masks (9, TM)."""
    HW = Ho * Wo
    p = np.arange(HWp)
    valid = (p < HW).astype(np.float32)
    i = np.minimum(p, HW - 1) // Wo
    j = np.minimum(p, HW - 1) % Wo
    taps = []
    for kh in range(3):
        for kw in range(3):
            dh, dw = kh - 1, kw - 1
            ok = (i + dh >= 0) & (i + dh < Ho) & (j + dw >= 0) & (j + dw < Wo)
            taps.append(ok.astype(np.float32) * valid)
    tap = np.tile(np.stack(taps, axis=0), (1, nb))      # (9, TM)
    pix = np.tile(valid[None, :], (1, nb))              # (1, TM)
    return jnp.asarray(pix), jnp.asarray(tap)


def _tile_spec(c, tm):
    return pl.BlockSpec((c, tm), lambda g: (0, g))


def _const_spec(shape):
    nd = len(shape)
    return pl.BlockSpec(tuple(shape), lambda g, _nd=nd: (0,) * _nd)


def _stats_spec(c):
    return pl.BlockSpec((None, c, 2), lambda g: (g, 0, 0))


def _bn_affine(partial_stats, count, gamma, beta):
    """Finalize per-channel batch stats -> folded BN affine (scale, shift)."""
    tot = jnp.sum(partial_stats, axis=0)                # (C, 2)
    mean = tot[:, 0] / count
    var = tot[:, 1] / count - mean * mean               # single-pass variance
    scale = gamma * lax.rsqrt(var + _EPS)
    shift = beta - mean * scale
    return (scale[:, None].astype(jnp.float32),
            shift[:, None].astype(jnp.float32))


def init_params(key, in_channel, output_channel, use_branch=True):
    """Deterministic synthetic parameters in PyTorch layouts (OIHW / per-channel)."""
    c4 = output_channel // 4
    keys = jax.random.split(key, 8)

    def conv_w(k, co, ci, kh, kw):
        return 0.1 * jax.random.normal(k, (co, ci, kh, kw), jnp.float32)

    def conv_b(k, co):
        return 0.1 * jax.random.normal(k, (co,), jnp.float32)

    p = {}
    if use_branch:
        p["w1"] = conv_w(keys[0], output_channel, in_channel, 1, 1)
        p["b1"] = conv_b(keys[1], output_channel)
    p["w2a"], p["b2a"] = conv_w(keys[2], c4, in_channel, 1, 1), conv_b(keys[3], c4)
    p["w2b"], p["b2b"] = conv_w(keys[4], c4, c4, 3, 3), conv_b(keys[5], c4)
    p["w2c"], p["b2c"] = conv_w(keys[6], output_channel, c4, 1, 1), conv_b(keys[7], output_channel)
    # BatchNorm2d default init (weight=1, bias=0); batch stats are used in-kernel.
    p["ga"], p["ba"] = jnp.ones((c4,), jnp.float32), jnp.zeros((c4,), jnp.float32)
    p["gb"], p["bb"] = jnp.ones((c4,), jnp.float32), jnp.zeros((c4,), jnp.float32)
    p["gc"], p["bc"] = (jnp.ones((output_channel,), jnp.float32),
                        jnp.zeros((output_channel,), jnp.float32))
    return p


# ---------------------------------------------------------------------------
# forward pass
# ---------------------------------------------------------------------------
def residual_block_forward(x_nchw, params, strides=1, use_branch=True,
                           tile_lanes=2048):
    N, Cin, H, W = x_nchw.shape
    Cout, C4 = params["w2c"].shape[:2]
    if not use_branch:
        assert Cin == Cout and strides == 1, \
            "identity shortcut needs matching channels and stride 1"

    # stride-s 1x1 conv == 1x1 conv on the stride-subsampled input.
    x = jnp.transpose(x_nchw, (0, 2, 3, 1))[:, ::strides, ::strides, :]   # NHWC
    _, Ho, Wo, _ = x.shape
    HW = Ho * Wo
    HWp = _round_up(HW, 128)                  # lane-pad each image to 128
    nb = _images_per_tile(N, HWp, tile_lanes)
    TM = nb * HWp                             # lanes per tile (image aligned)
    Mp = N * HWp
    G = Mp // TM
    count = jnp.float32(N * HW)               # valid pixels for BN means

    # lane-dense (C, M) slab: lane index = image * HWp + (i*Wo + j)
    x2 = jnp.pad(x.reshape(N, HW, Cin), ((0, 0), (0, HWp - HW), (0, 0)))
    xT = jnp.transpose(x2, (2, 0, 1)).reshape(Cin, Mp).astype(_MXU_DTYPE)

    pix, tap = _build_masks(Ho, Wo, HWp, nb)

    # weight / bias re-layout (PyTorch OIHW -> (Cout, K) kernel layouts)
    w2a = params["w2a"].reshape(C4, Cin).astype(_MXU_DTYPE)
    b2a = params["b2a"].reshape(C4, 1).astype(jnp.float32)
    w2b = jnp.transpose(params["w2b"], (0, 2, 3, 1)).reshape(C4, 9 * C4).astype(_MXU_DTYPE)
    b2b = params["b2b"].reshape(C4, 1).astype(jnp.float32)
    w2c = params["w2c"].reshape(Cout, C4).astype(_MXU_DTYPE)
    b2c = params["b2c"].reshape(Cout, 1).astype(jnp.float32)

    cparams = pltpu.CompilerParams(dimension_semantics=("parallel",),
                                   vmem_limit_bytes=_VMEM_LIMIT)

    # ------------- pass 1: 1x1 convs (branch1 + stage a) + stats_a ----------
    inputs = [xT, pix, w2a, b2a]
    in_specs = [_tile_spec(Cin, TM), _const_spec(pix.shape),
                _const_spec(w2a.shape), _const_spec(b2a.shape)]
    out_shapes, out_specs = [], []
    if use_branch:
        w1 = params["w1"].reshape(Cout, Cin).astype(_MXU_DTYPE)
        b1 = params["b1"].reshape(Cout, 1).astype(jnp.float32)
        inputs += [w1, b1]
        in_specs += [_const_spec(w1.shape), _const_spec(b1.shape)]
        out_shapes.append(jax.ShapeDtypeStruct((Cout, Mp), jnp.float32))
        out_specs.append(_tile_spec(Cout, TM))
    out_shapes += [jax.ShapeDtypeStruct((C4, Mp), jnp.float32),
                   jax.ShapeDtypeStruct((G, C4, 2), jnp.float32)]
    out_specs += [_tile_spec(C4, TM), _stats_spec(C4)]

    res1 = pl.pallas_call(
        functools.partial(_pass1_kernel, use_branch),
        grid=(G,),
        in_specs=in_specs,
        out_specs=tuple(out_specs),
        out_shape=tuple(out_shapes),
        compiler_params=cparams,
        cost_estimate=pl.CostEstimate(
            flops=2 * Mp * Cin * (C4 + (Cout if use_branch else 0)),
            transcendentals=0,
            bytes_accessed=2 * Cin * Mp + 4 * (C4 + Cout) * Mp),
    )(*inputs)
    if use_branch:
        br1T, m1preT, st_a = res1
    else:
        m1preT, st_a = res1
        br1T = xT                               # identity shortcut, no matmul

    sc_a, sh_a = _bn_affine(st_a, count, params["ga"], params["ba"])

    # ------------- pass 2: BN-a + ReLU + fused 3x3 conv + stats_b -----------
    accT, st_b = pl.pallas_call(
        functools.partial(_pass2_kernel, Wo),
        grid=(G,),
        in_specs=[_tile_spec(C4, TM), _const_spec(pix.shape),
                  _const_spec(tap.shape),
                  _const_spec(sc_a.shape), _const_spec(sh_a.shape),
                  _const_spec(w2b.shape), _const_spec(b2b.shape)],
        out_specs=(_tile_spec(C4, TM), _stats_spec(C4)),
        out_shape=(jax.ShapeDtypeStruct((C4, Mp), jnp.float32),
                   jax.ShapeDtypeStruct((G, C4, 2), jnp.float32)),
        compiler_params=cparams,
        cost_estimate=pl.CostEstimate(
            flops=2 * Mp * 9 * C4 * C4, transcendentals=0,
            bytes_accessed=8 * C4 * Mp),
    )(m1preT, pix, tap, sc_a, sh_a, w2b, b2b)

    sc_b, sh_b = _bn_affine(st_b, count, params["gb"], params["bb"])

    # ------------- pass 3: BN-b + ReLU + 1x1 conv (stage c) + stats_c -------
    m3preT, st_c = pl.pallas_call(
        _pass3_kernel,
        grid=(G,),
        in_specs=[_tile_spec(C4, TM), _const_spec(pix.shape),
                  _const_spec(sc_b.shape), _const_spec(sh_b.shape),
                  _const_spec(w2c.shape), _const_spec(b2c.shape)],
        out_specs=(_tile_spec(Cout, TM), _stats_spec(Cout)),
        out_shape=(jax.ShapeDtypeStruct((Cout, Mp), jnp.float32),
                   jax.ShapeDtypeStruct((G, Cout, 2), jnp.float32)),
        compiler_params=cparams,
        cost_estimate=pl.CostEstimate(
            flops=2 * Mp * C4 * Cout, transcendentals=0,
            bytes_accessed=4 * (C4 + Cout) * Mp),
    )(accT, pix, sc_b, sh_b, w2c, b2c)

    sc_c, sh_c = _bn_affine(st_c, count, params["gc"], params["bc"])

    # ------------- pass 4: BN-c + residual add + final ReLU -----------------
    outT = pl.pallas_call(
        _pass4_kernel,
        grid=(G,),
        in_specs=[_tile_spec(Cout, TM), _tile_spec(Cout, TM),
                  _const_spec(sc_c.shape), _const_spec(sh_c.shape)],
        out_specs=_tile_spec(Cout, TM),
        out_shape=jax.ShapeDtypeStruct((Cout, Mp), jnp.float32),
        compiler_params=cparams,
        cost_estimate=pl.CostEstimate(
            flops=4 * Cout * Mp, transcendentals=0,
            bytes_accessed=12 * Cout * Mp),
    )(m3preT, br1T, sc_c, sh_c)

    out = outT.reshape(Cout, N, HWp)[:, :, :HW].reshape(Cout, N, Ho, Wo)
    return jnp.transpose(out, (1, 0, 2, 3))                              # NCHW


# ---------------------------------------------------------------------------
# pure-JAX reference (PyTorch forward, training-mode BN)
# ---------------------------------------------------------------------------
def _reference_forward(x, p, strides=1, use_branch=True):
    def conv(x, w, b, stride, pad):
        y = lax.conv_general_dilated(x, w, (stride, stride),
                                     [(pad, pad), (pad, pad)],
                                     dimension_numbers=("NCHW", "OIHW", "NCHW"))
        return y + b[None, :, None, None]

    def bn(x, g, bta):
        mu = jnp.mean(x, axis=(0, 2, 3), keepdims=True)
        var = jnp.mean(jnp.square(x - mu), axis=(0, 2, 3), keepdims=True)
        return (g[None, :, None, None] * (x - mu) * lax.rsqrt(var + _EPS)
                + bta[None, :, None, None])

    relu = lambda t: jnp.maximum(t, 0.0)
    br1 = conv(x, p["w1"], p["b1"], strides, 0) if use_branch else x
    m = relu(bn(conv(x, p["w2a"], p["b2a"], strides, 0), p["ga"], p["ba"]))
    m = relu(bn(conv(m, p["w2b"], p["b2b"], 1, 1), p["gb"], p["bb"]))
    m = bn(conv(m, p["w2c"], p["b2c"], 1, 0), p["gc"], p["bc"])
    return relu(m + br1)


if __name__ == "__main__":
    key = jax.random.PRNGKey(0)
    kx, kp = jax.random.split(key)

    N, Cin, H, W = 2, 4, 16, 16        # x: (2, 4, 16, 16) NCHW
    Cout, strides = 16, 1              # output_channel=16 -> bottleneck width 4
    x = jax.random.normal(kx, (N, Cin, H, W), jnp.float32)
    params = init_params(kp, Cin, Cout, use_branch=True)

    # tile_lanes=256 -> 1 image per tile -> 2 grid steps (exercises tiling +
    # cross-tile stat reduction).  Default (2048) targets realistic sizes.
    fwd = jax.jit(functools.partial(residual_block_forward, strides=strides,
                                    use_branch=True, tile_lanes=256))
    out = jax.block_until_ready(fwd(x, params))

    ref = _reference_forward(x, params, strides=strides, use_branch=True)
    assert out.shape == (N, Cout, H // strides, W // strides)
    # tolerance sized for bf16 MXU operands through three conv+BN stages
    np.testing.assert_allclose(np.asarray(out), np.asarray(ref),
                               atol=5e-2, rtol=5e-2)
    print("KERNEL_OK")
</pallas_src>

<mosaic_0001>
module attributes {stable_mosaic.version = 11 : i64} {
  func.func @_pass1_kernel(%arg0: i32, %arg1: memref<4x256xbf16, #tpu.memory_space<vmem>>, %arg2: memref<1x256xf32, #tpu.memory_space<vmem>>, %arg3: memref<4x4xbf16, #tpu.memory_space<vmem>>, %arg4: memref<4x1xf32, #tpu.memory_space<vmem>>, %arg5: memref<16x4xbf16, #tpu.memory_space<vmem>>, %arg6: memref<16x1xf32, #tpu.memory_space<vmem>>, %arg7: memref<16x256xf32, #tpu.memory_space<vmem>>, %arg8: memref<4x256xf32, #tpu.memory_space<vmem>>, %arg9: memref<1x4x2xf32, #tpu.memory_space<vmem>>) attributes {dimension_semantics = [#tpu.dimension_semantics<parallel>], iteration_bounds = array<i64: 2>, scalar_prefetch = 0 : i64, scratch_operands = 0 : i64, tpu.core_type = #tpu.core_type<tc>, window_params = [{transform_indices = @transform_0, window_bounds = array<i64: 4, 256>}, {pipeline_mode = #tpu.pipeline_mode<synchronous>, transform_indices = @transform_1, window_bounds = array<i64: 1, 256>}, {pipeline_mode = #tpu.pipeline_mode<synchronous>, transform_indices = @transform_2, window_bounds = array<i64: 4, 4>}, {pipeline_mode = #tpu.pipeline_mode<synchronous>, transform_indices = @transform_3, window_bounds = array<i64: 4, 1>}, {pipeline_mode = #tpu.pipeline_mode<synchronous>, transform_indices = @transform_4, window_bounds = array<i64: 16, 4>}, {pipeline_mode = #tpu.pipeline_mode<synchronous>, transform_indices = @transform_5, window_bounds = array<i64: 16, 1>}, {transform_indices = @transform_6, window_bounds = array<i64: 16, 256>}, {transform_indices = @transform_7, window_bounds = array<i64: 4, 256>}, {transform_indices = @transform_8, window_bounds = array<i64: 1, 4, 2>}]} {
    %c0 = arith.constant 0 : index
    %c0_0 = arith.constant 0 : index
    %0 = vector.load %arg1[%c0, %c0_0] : memref<4x256xbf16, #tpu.memory_space<vmem>>, vector<4x256xbf16>
    %c0_1 = arith.constant 0 : index
    %c0_2 = arith.constant 0 : index
    %1 = vector.load %arg3[%c0_1, %c0_2] : memref<4x4xbf16, #tpu.memory_space<vmem>>, vector<4x4xbf16>
    %cst = arith.constant dense<0.000000e+00> : vector<4x256xf32>
    %2 = tpu.matmul %1, %0, %cst {dimension_numbers = #tpu.dot_dimension_numbers<[1], [0], [0], [1], [0, 0, 1, 1], [], []>} : vector<4x4xbf16>, vector<4x256xbf16>, vector<4x256xf32> -> vector<4x256xf32>
    %c0_3 = arith.constant 0 : index
    %c0_4 = arith.constant 0 : index
    %3 = vector.load %arg4[%c0_3, %c0_4] : memref<4x1xf32, #tpu.memory_space<vmem>>, vector<4x1xf32>
    %4 = vector.broadcast %3 : vector<4x1xf32> to vector<4x256xf32>
    %5 = arith.addf %2, %4 : vector<4x256xf32>
    %c0_5 = arith.constant 0 : index
    %c0_6 = arith.constant 0 : index
    %6 = vector.load %arg8[%c0_5, %c0_6] : memref<4x256xf32, #tpu.memory_space<vmem>>, vector<4x256xf32>
    tpu.vector_store %arg8[%c0_5, %c0_6], %5 {strides = array<i32>} : memref<4x256xf32, #tpu.memory_space<vmem>>, vector<4x256xf32>,
    %c0_7 = arith.constant 0 : index
    %c0_8 = arith.constant 0 : index
    %7 = vector.load %arg2[%c0_7, %c0_8] : memref<1x256xf32, #tpu.memory_space<vmem>>, vector<1x256xf32>
    %8 = vector.broadcast %7 : vector<1x256xf32> to vector<4x256xf32>
    %9 = arith.mulf %5, %8 : vector<4x256xf32>
    %cst_9 = arith.constant dense<0.000000e+00> : vector<4xf32>
    %10 = vector.multi_reduction <add>, %9, %cst_9 [1] : vector<4x256xf32> to vector<4xf32>
    %11 = vector.shape_cast %10 : vector<4xf32> to vector<4x1xf32>
    %c0_10 = arith.constant 0 : index
    %c0_11 = arith.constant 0 : index
    %c0_12 = arith.constant 0 : index
    %12 = vector.load %arg9[%c0_10, %c0_11, %c0_12] : memref<1x4x2xf32, #tpu.memory_space<vmem>>, vector<1x4x1xf32>
    %13 = vector.shape_cast %12 : vector<1x4x1xf32> to vector<4x1xf32>
    %14 = vector.shape_cast %11 : vector<4x1xf32> to vector<1x4x1xf32>
    tpu.vector_store %arg9[%c0_10, %c0_11, %c0_12], %14 {strides = array<i32>} : memref<1x4x2xf32, #tpu.memory_space<vmem>>, vector<1x4x1xf32>,
    %15 = arith.mulf %9, %5 : vector<4x256xf32>
    %cst_13 = arith.constant dense<0.000000e+00> : vector<4xf32>
    %16 = vector.multi_reduction <add>, %15, %cst_13 [1] : vector<4x256xf32> to vector<4xf32>
    %17 = vector.shape_cast %16 : vector<4xf32> to vector<4x1xf32>
    %c0_14 = arith.constant 0 : index
    %c0_15 = arith.constant 0 : index
    %c1 = arith.constant 1 : index
    %18 = vector.load %arg9[%c0_14, %c0_15, %c1] : memref<1x4x2xf32, #tpu.memory_space<vmem>>, vector<1x4x1xf32>
    %19 = vector.shape_cast %18 : vector<1x4x1xf32> to vector<4x1xf32>
    %20 = vector.shape_cast %17 : vector<4x1xf32> to vector<1x4x1xf32>
    tpu.vector_store %arg9[%c0_14, %c0_15, %c1], %20 {strides = array<i32>} : memref<1x4x2xf32, #tpu.memory_space<vmem>>, vector<1x4x1xf32>,
    %c0_16 = arith.constant 0 : index
    %c0_17 = arith.constant 0 : index
    %21 = vector.load %arg5[%c0_16, %c0_17] : memref<16x4xbf16, #tpu.memory_space<vmem>>, vector<16x4xbf16>
    %cst_18 = arith.constant dense<0.000000e+00> : vector<16x256xf32>
    %22 = tpu.matmul %21, %0, %cst_18 {dimension_numbers = #tpu.dot_dimension_numbers<[1], [0], [0], [1], [0, 0, 1, 1], [], []>} : vector<16x4xbf16>, vector<4x256xbf16>, vector<16x256xf32> -> vector<16x256xf32>
    %c0_19 = arith.constant 0 : index
    %c0_20 = arith.constant 0 : index
    %23 = vector.load %arg6[%c0_19, %c0_20] : memref<16x1xf32, #tpu.memory_space<vmem>>, vector<16x1xf32>
    %24 = vector.broadcast %23 : vector<16x1xf32> to vector<16x256xf32>
    %25 = arith.addf %22, %24 : vector<16x256xf32>
    %c0_21 = arith.constant 0 : index
    %c0_22 = arith.constant 0 : index
    %26 = vector.load %arg7[%c0_21, %c0_22] : memref<16x256xf32, #tpu.memory_space<vmem>>, vector<16x256xf32>
    tpu.vector_store %arg7[%c0_21, %c0_22], %25 {strides = array<i32>} : memref<16x256xf32, #tpu.memory_space<vmem>>, vector<16x256xf32>,
    return
  }
  func.func @transform_0(%arg0: i32) -> (i32, i32) {
    %c0_i32 = arith.constant 0 : i32
    %c0_i32_0 = arith.constant 0 : i32
    return %c0_i32, %arg0 : i32, i32
  }
  func.func @transform_1(%arg0: i32) -> (i32, i32) {
    %c0_i32 = arith.constant 0 : i32
    %c0_i32_0 = arith.constant 0 : i32
    %c0_i32_1 = arith.constant 0 : i32
    return %c0_i32, %c0_i32_0 : i32, i32
  }
  func.func @transform_2(%arg0: i32) -> (i32, i32) {
    %c0_i32 = arith.constant 0 : i32
    %c0_i32_0 = arith.constant 0 : i32
    %c0_i32_1 = arith.constant 0 : i32
    return %c0_i32, %c0_i32_0 : i32, i32
  }
  func.func @transform_3(%arg0: i32) -> (i32, i32) {
    %c0_i32 = arith.constant 0 : i32
    %c0_i32_0 = arith.constant 0 : i32
    %c0_i32_1 = arith.constant 0 : i32
    return %c0_i32, %c0_i32_0 : i32, i32
  }
  func.func @transform_4(%arg0: i32) -> (i32, i32) {
    %c0_i32 = arith.constant 0 : i32
    %c0_i32_0 = arith.constant 0 : i32
    %c0_i32_1 = arith.constant 0 : i32
    return %c0_i32, %c0_i32_0 : i32, i32
  }
  func.func @transform_5(%arg0: i32) -> (i32, i32) {
    %c0_i32 = arith.constant 0 : i32
    %c0_i32_0 = arith.constant 0 : i32
    %c0_i32_1 = arith.constant 0 : i32
    return %c0_i32, %c0_i32_0 : i32, i32
  }
  func.func @transform_6(%arg0: i32) -> (i32, i32) {
    %c0_i32 = arith.constant 0 : i32
    %c0_i32_0 = arith.constant 0 : i32
    return %c0_i32, %arg0 : i32, i32
  }
  func.func @transform_7(%arg0: i32) -> (i32, i32) {
    %c0_i32 = arith.constant 0 : i32
    %c0_i32_0 = arith.constant 0 : i32
    return %c0_i32, %arg0 : i32, i32
  }
  func.func @transform_8(%arg0: i32) -> (i32, i32, i32) {
    %c0_i32 = arith.constant 0 : i32
    %c0_i32_0 = arith.constant 0 : i32
    %c0_i32_1 = arith.constant 0 : i32
    return %arg0, %c0_i32, %c0_i32_0 : i32, i32, i32
  }
}

module attributes {stable_mosaic.version = 11 : i64} {
  func.func @_pass2_kernel(%arg0: i32, %arg1: memref<4x256xf32, #tpu.memory_space<vmem>>, %arg2: memref<1x256xf32, #tpu.memory_space<vmem>>, %arg3: memref<9x256xf32, #tpu.memory_space<vmem>>, %arg4: memref<4x1xf32, #tpu.memory_space<vmem>>, %arg5: memref<4x1xf32, #tpu.memory_space<vmem>>, %arg6: memref<4x36xbf16, #tpu.memory_space<vmem>>, %arg7: memref<4x1xf32, #tpu.memory_space<vmem>>, %arg8: memref<4x256xf32, #tpu.memory_space<vmem>>, %arg9: memref<1x4x2xf32, #tpu.memory_space<vmem>>) attributes {dimension_semantics = [#tpu.dimension_semantics<parallel>], iteration_bounds = array<i64: 2>, scalar_prefetch = 0 : i64, scratch_operands = 0 : i64, tpu.core_type = #tpu.core_type<tc>, window_params = [{transform_indices = @transform_0, window_bounds = array<i64: 4, 256>}, {pipeline_mode = #tpu.pipeline_mode<synchronous>, transform_indices = @transform_1, window_bounds = array<i64: 1, 256>}, {pipeline_mode = #tpu.pipeline_mode<synchronous>, transform_indices = @transform_2, window_bounds = array<i64: 9, 256>}, {pipeline_mode = #tpu.pipeline_mode<synchronous>, transform_indices = @transform_3, window_bounds = array<i64: 4, 1>}, {pipeline_mode = #tpu.pipeline_mode<synchronous>, transform_indices = @transform_4, window_bounds = array<i64: 4, 1>}, {pipeline_mode = #tpu.pipeline_mode<synchronous>, transform_indices = @transform_5, window_bounds = array<i64: 4, 36>}, {pipeline_mode = #tpu.pipeline_mode<synchronous>, transform_indices = @transform_6, window_bounds = array<i64: 4, 1>}, {transform_indices = @transform_7, window_bounds = array<i64: 4, 256>}, {transform_indices = @transform_8, window_bounds = array<i64: 1, 4, 2>}]} {
    %c0 = arith.constant 0 : index
    %c0_0 = arith.constant 0 : index
    %0 = vector.load %arg4[%c0, %c0_0] : memref<4x1xf32, #tpu.memory_space<vmem>>, vector<4x1xf32>
    %c0_1 = arith.constant 0 : index
    %c0_2 = arith.constant 0 : index
    %1 = vector.load %arg1[%c0_1, %c0_2] : memref<4x256xf32, #tpu.memory_space<vmem>>, vector<4x256xf32>
    %2 = vector.broadcast %0 : vector<4x1xf32> to vector<4x256xf32>
    %3 = arith.mulf %2, %1 : vector<4x256xf32>
    %c0_3 = arith.constant 0 : index
    %c0_4 = arith.constant 0 : index
    %4 = vector.load %arg5[%c0_3, %c0_4] : memref<4x1xf32, #tpu.memory_space<vmem>>, vector<4x1xf32>
    %5 = vector.broadcast %4 : vector<4x1xf32> to vector<4x256xf32>
    %6 = arith.addf %3, %5 : vector<4x256xf32>
    %cst = arith.constant 0.000000e+00 : f32
    %7 = vector.broadcast %cst : f32 to vector<4x256xf32>
    %8 = arith.maximumf %6, %7 : vector<4x256xf32>
    %c0_5 = arith.constant 0 : index
    %c0_6 = arith.constant 0 : index
    %9 = vector.load %arg3[%c0_5, %c0_6] : memref<9x256xf32, #tpu.memory_space<vmem>>, vector<9x256xf32>
    %c17_i32 = arith.constant 17 : i32
    %10 = tpu.dynamic_rotate %8 by %c17_i32 dim 1 : vector<4x256xf32>, i32 -> vector<4x256xf32>
    %11 = vector.extract_strided_slice %9 {offsets = [0, 0], sizes = [1, 256], strides = [1, 1]} : vector<9x256xf32> to vector<1x256xf32>
    %12 = vector.broadcast %11 : vector<1x256xf32> to vector<4x256xf32>
    %13 = arith.mulf %10, %12 : vector<4x256xf32>
    %c16_i32 = arith.constant 16 : i32
    %14 = tpu.dynamic_rotate %8 by %c16_i32 dim 1 : vector<4x256xf32>, i32 -> vector<4x256xf32>
    %15 = vector.extract_strided_slice %9 {offsets = [1, 0], sizes = [1, 256], strides = [1, 1]} : vector<9x256xf32> to vector<1x256xf32>
    %16 = vector.broadcast %15 : vector<1x256xf32> to vector<4x256xf32>
    %17 = arith.mulf %14, %16 : vector<4x256xf32>
    %c15_i32 = arith.constant 15 : i32
    %18 = tpu.dynamic_rotate %8 by %c15_i32 dim 1 : vector<4x256xf32>, i32 -> vector<4x256xf32>
    %19 = vector.extract_strided_slice %9 {offsets = [2, 0], sizes = [1, 256], strides = [1, 1]} : vector<9x256xf32> to vector<1x256xf32>
    %20 = vector.broadcast %19 : vector<1x256xf32> to vector<4x256xf32>
    %21 = arith.mulf %18, %20 : vector<4x256xf32>
    %c1_i32 = arith.constant 1 : i32
    %22 = tpu.dynamic_rotate %8 by %c1_i32 dim 1 : vector<4x256xf32>, i32 -> vector<4x256xf32>
    %23 = vector.extract_strided_slice %9 {offsets = [3, 0], sizes = [1, 256], strides = [1, 1]} : vector<9x256xf32> to vector<1x256xf32>
    %24 = vector.broadcast %23 : vector<1x256xf32> to vector<4x256xf32>
    %25 = arith.mulf %22, %24 : vector<4x256xf32>
    %26 = vector.extract_strided_slice %9 {offsets = [4, 0], sizes = [1, 256], strides = [1, 1]} : vector<9x256xf32> to vector<1x256xf32>
    %27 = vector.broadcast %26 : vector<1x256xf32> to vector<4x256xf32>
    %28 = arith.mulf %8, %27 : vector<4x256xf32>
    %c255_i32 = arith.constant 255 : i32
    %29 = tpu.dynamic_rotate %8 by %c255_i32 dim 1 : vector<4x256xf32>, i32 -> vector<4x256xf32>
    %30 = vector.extract_strided_slice %9 {offsets = [5, 0], sizes = [1, 256], strides = [1, 1]} : vector<9x256xf32> to vector<1x256xf32>
    %31 = vector.broadcast %30 : vector<1x256xf32> to vector<4x256xf32>
    %32 = arith.mulf %29, %31 : vector<4x256xf32>
    %c241_i32 = arith.constant 241 : i32
    %33 = tpu.dynamic_rotate %8 by %c241_i32 dim 1 : vector<4x256xf32>, i32 -> vector<4x256xf32>
    %34 = vector.extract_strided_slice %9 {offsets = [6, 0], sizes = [1, 256], strides = [1, 1]} : vector<9x256xf32> to vector<1x256xf32>
    %35 = vector.broadcast %34 : vector<1x256xf32> to vector<4x256xf32>
    %36 = arith.mulf %33, %35 : vector<4x256xf32>
    %c240_i32 = arith.constant 240 : i32
    %37 = tpu.dynamic_rotate %8 by %c240_i32 dim 1 : vector<4x256xf32>, i32 -> vector<4x256xf32>
    %38 = vector.extract_strided_slice %9 {offsets = [7, 0], sizes = [1, 256], strides = [1, 1]} : vector<9x256xf32> to vector<1x256xf32>
    %39 = vector.broadcast %38 : vector<1x256xf32> to vector<4x256xf32>
    %40 = arith.mulf %37, %39 : vector<4x256xf32>
    %c239_i32 = arith.constant 239 : i32
    %41 = tpu.dynamic_rotate %8 by %c239_i32 dim 1 : vector<4x256xf32>, i32 -> vector<4x256xf32>
    %42 = vector.extract_strided_slice %9 {offsets = [8, 0], sizes = [1, 256], strides = [1, 1]} : vector<9x256xf32> to vector<1x256xf32>
    %43 = vector.broadcast %42 : vector<1x256xf32> to vector<4x256xf32>
    %44 = arith.mulf %41, %43 : vector<4x256xf32>
    %45 = tpu.concatenate %13, %17, %21, %25, %28, %32, %36, %40, %44 in 0 : vector<4x256xf32>, vector<4x256xf32>, vector<4x256xf32>, vector<4x256xf32>, vector<4x256xf32>, vector<4x256xf32>, vector<4x256xf32>, vector<4x256xf32>, vector<4x256xf32> -> vector<36x256xf32>
    %46 = arith.truncf %45 : vector<36x256xf32> to vector<36x256xbf16>
    %c0_7 = arith.constant 0 : index
    %c0_8 = arith.constant 0 : index
    %47 = vector.load %arg6[%c0_7, %c0_8] : memref<4x36xbf16, #tpu.memory_space<vmem>>, vector<4x36xbf16>
    %cst_9 = arith.constant dense<0.000000e+00> : vector<4x256xf32>
    %48 = tpu.matmul %47, %46, %cst_9 {dimension_numbers = #tpu.dot_dimension_numbers<[1], [0], [0], [1], [0, 0, 1, 1], [], []>} : vector<4x36xbf16>, vector<36x256xbf16>, vector<4x256xf32> -> vector<4x256xf32>
    %c0_10 = arith.constant 0 : index
    %c0_11 = arith.constant 0 : index
    %49 = vector.load %arg7[%c0_10, %c0_11] : memref<4x1xf32, #tpu.memory_space<vmem>>, vector<4x1xf32>
    %50 = vector.broadcast %49 : vector<4x1xf32> to vector<4x256xf32>
    %51 = arith.addf %48, %50 : vector<4x256xf32>
    %c0_12 = arith.constant 0 : index
    %c0_13 = arith.constant 0 : index
    %52 = vector.load %arg8[%c0_12, %c0_13] : memref<4x256xf32, #tpu.memory_space<vmem>>, vector<4x256xf32>
    tpu.vector_store %arg8[%c0_12, %c0_13], %51 {strides = array<i32>} : memref<4x256xf32, #tpu.memory_space<vmem>>, vector<4x256xf32>,
    %c0_14 = arith.constant 0 : index
    %c0_15 = arith.constant 0 : index
    %53 = vector.load %arg2[%c0_14, %c0_15] : memref<1x256xf32, #tpu.memory_space<vmem>>, vector<1x256xf32>
    %54 = vector.broadcast %53 : vector<1x256xf32> to vector<4x256xf32>
    %55 = arith.mulf %51, %54 : vector<4x256xf32>
    %cst_16 = arith.constant dense<0.000000e+00> : vector<4xf32>
    %56 = vector.multi_reduction <add>, %55, %cst_16 [1] : vector<4x256xf32> to vector<4xf32>
    %57 = vector.shape_cast %56 : vector<4xf32> to vector<4x1xf32>
    %c0_17 = arith.constant 0 : index
    %c0_18 = arith.constant 0 : index
    %c0_19 = arith.constant 0 : index
    %58 = vector.load %arg9[%c0_17, %c0_18, %c0_19] : memref<1x4x2xf32, #tpu.memory_space<vmem>>, vector<1x4x1xf32>
    %59 = vector.shape_cast %58 : vector<1x4x1xf32> to vector<4x1xf32>
    %60 = vector.shape_cast %57 : vector<4x1xf32> to vector<1x4x1xf32>
    tpu.vector_store %arg9[%c0_17, %c0_18, %c0_19], %60 {strides = array<i32>} : memref<1x4x2xf32, #tpu.memory_space<vmem>>, vector<1x4x1xf32>,
    %61 = arith.mulf %55, %51 : vector<4x256xf32>
    %cst_20 = arith.constant dense<0.000000e+00> : vector<4xf32>
    %62 = vector.multi_reduction <add>, %61, %cst_20 [1] : vector<4x256xf32> to vector<4xf32>
    %63 = vector.shape_cast %62 : vector<4xf32> to vector<4x1xf32>
    %c0_21 = arith.constant 0 : index
    %c0_22 = arith.constant 0 : index
    %c1 = arith.constant 1 : index
    %64 = vector.load %arg9[%c0_21, %c0_22, %c1] : memref<1x4x2xf32, #tpu.memory_space<vmem>>, vector<1x4x1xf32>
    %65 = vector.shape_cast %64 : vector<1x4x1xf32> to vector<4x1xf32>
    %66 = vector.shape_cast %63 : vector<4x1xf32> to vector<1x4x1xf32>
    tpu.vector_store %arg9[%c0_21, %c0_22, %c1], %66 {strides = array<i32>} : memref<1x4x2xf32, #tpu.memory_space<vmem>>, vector<1x4x1xf32>,
    return
  }
  func.func @transform_0(%arg0: i32) -> (i32, i32) {
    %c0_i32 = arith.constant 0 : i32
    %c0_i32_0 = arith.constant 0 : i32
    return %c0_i32, %arg0 : i32, i32
  }
  func.func @transform_1(%arg0: i32) -> (i32, i32) {
    %c0_i32 = arith.constant 0 : i32
    %c0_i32_0 = arith.constant 0 : i32
    %c0_i32_1 = arith.constant 0 : i32
    return %c0_i32, %c0_i32_0 : i32, i32
  }
  func.func @transform_2(%arg0: i32) -> (i32, i32) {
    %c0_i32 = arith.constant 0 : i32
    %c0_i32_0 = arith.constant 0 : i32
    %c0_i32_1 = arith.constant 0 : i32
    return %c0_i32, %c0_i32_0 : i32, i32
  }
  func.func @transform_3(%arg0: i32) -> (i32, i32) {
    %c0_i32 = arith.constant 0 : i32
    %c0_i32_0 = arith.constant 0 : i32
    %c0_i32_1 = arith.constant 0 : i32
    return %c0_i32, %c0_i32_0 : i32, i32
  }
  func.func @transform_4(%arg0: i32) -> (i32, i32) {
    %c0_i32 = arith.constant 0 : i32
    %c0_i32_0 = arith.constant 0 : i32
    %c0_i32_1 = arith.constant 0 : i32
    return %c0_i32, %c0_i32_0 : i32, i32
  }
  func.func @transform_5(%arg0: i32) -> (i32, i32) {
    %c0_i32 = arith.constant 0 : i32
    %c0_i32_0 = arith.constant 0 : i32
    %c0_i32_1 = arith.constant 0 : i32
    return %c0_i32, %c0_i32_0 : i32, i32
  }
  func.func @transform_6(%arg0: i32) -> (i32, i32) {
    %c0_i32 = arith.constant 0 : i32
    %c0_i32_0 = arith.constant 0 : i32
    %c0_i32_1 = arith.constant 0 : i32
    return %c0_i32, %c0_i32_0 : i32, i32
  }
  func.func @transform_7(%arg0: i32) -> (i32, i32) {
    %c0_i32 = arith.constant 0 : i32
    %c0_i32_0 = arith.constant 0 : i32
    return %c0_i32, %arg0 : i32, i32
  }
  func.func @transform_8(%arg0: i32) -> (i32, i32, i32) {
    %c0_i32 = arith.constant 0 : i32
    %c0_i32_0 = arith.constant 0 : i32
    %c0_i32_1 = arith.constant 0 : i32
    return %arg0, %c0_i32, %c0_i32_0 : i32, i32, i32
  }
}

module attributes {stable_mosaic.version = 11 : i64} {
  func.func @_pass3_kernel(%arg0: i32, %arg1: memref<4x256xf32, #tpu.memory_space<vmem>>, %arg2: memref<1x256xf32, #tpu.memory_space<vmem>>, %arg3: memref<4x1xf32, #tpu.memory_space<vmem>>, %arg4: memref<4x1xf32, #tpu.memory_space<vmem>>, %arg5: memref<16x4xbf16, #tpu.memory_space<vmem>>, %arg6: memref<16x1xf32, #tpu.memory_space<vmem>>, %arg7: memref<16x256xf32, #tpu.memory_space<vmem>>, %arg8: memref<1x16x2xf32, #tpu.memory_space<vmem>>) attributes {dimension_semantics = [#tpu.dimension_semantics<parallel>], iteration_bounds = array<i64: 2>, scalar_prefetch = 0 : i64, scratch_operands = 0 : i64, tpu.core_type = #tpu.core_type<tc>, window_params = [{transform_indices = @transform_0, window_bounds = array<i64: 4, 256>}, {pipeline_mode = #tpu.pipeline_mode<synchronous>, transform_indices = @transform_1, window_bounds = array<i64: 1, 256>}, {pipeline_mode = #tpu.pipeline_mode<synchronous>, transform_indices = @transform_2, window_bounds = array<i64: 4, 1>}, {pipeline_mode = #tpu.pipeline_mode<synchronous>, transform_indices = @transform_3, window_bounds = array<i64: 4, 1>}, {pipeline_mode = #tpu.pipeline_mode<synchronous>, transform_indices = @transform_4, window_bounds = array<i64: 16, 4>}, {pipeline_mode = #tpu.pipeline_mode<synchronous>, transform_indices = @transform_5, window_bounds = array<i64: 16, 1>}, {transform_indices = @transform_6, window_bounds = array<i64: 16, 256>}, {transform_indices = @transform_7, window_bounds = array<i64: 1, 16, 2>}]} {
    %c0 = arith.constant 0 : index
    %c0_0 = arith.constant 0 : index
    %0 = vector.load %arg3[%c0, %c0_0] : memref<4x1xf32, #tpu.memory_space<vmem>>, vector<4x1xf32>
    %c0_1 = arith.constant 0 : index
    %c0_2 = arith.constant 0 : index
    %1 = vector.load %arg1[%c0_1, %c0_2] : memref<4x256xf32, #tpu.memory_space<vmem>>, vector<4x256xf32>
    %2 = vector.broadcast %0 : vector<4x1xf32> to vector<4x256xf32>
    %3 = arith.mulf %2, %1 : vector<4x256xf32>
    %c0_3 = arith.constant 0 : index
    %c0_4 = arith.constant 0 : index
    %4 = vector.load %arg4[%c0_3, %c0_4] : memref<4x1xf32, #tpu.memory_space<vmem>>, vector<4x1xf32>
    %5 = vector.broadcast %4 : vector<4x1xf32> to vector<4x256xf32>
    %6 = arith.addf %3, %5 : vector<4x256xf32>
    %cst = arith.constant 0.000000e+00 : f32
    %7 = vector.broadcast %cst : f32 to vector<4x256xf32>
    %8 = arith.maximumf %6, %7 : vector<4x256xf32>
    %c0_5 = arith.constant 0 : index
    %c0_6 = arith.constant 0 : index
    %9 = vector.load %arg5[%c0_5, %c0_6] : memref<16x4xbf16, #tpu.memory_space<vmem>>, vector<16x4xbf16>
    %10 = arith.truncf %8 : vector<4x256xf32> to vector<4x256xbf16>
    %cst_7 = arith.constant dense<0.000000e+00> : vector<16x256xf32>
    %11 = tpu.matmul %9, %10, %cst_7 {dimension_numbers = #tpu.dot_dimension_numbers<[1], [0], [0], [1], [0, 0, 1, 1], [], []>} : vector<16x4xbf16>, vector<4x256xbf16>, vector<16x256xf32> -> vector<16x256xf32>
    %c0_8 = arith.constant 0 : index
    %c0_9 = arith.constant 0 : index
    %12 = vector.load %arg6[%c0_8, %c0_9] : memref<16x1xf32, #tpu.memory_space<vmem>>, vector<16x1xf32>
    %13 = vector.broadcast %12 : vector<16x1xf32> to vector<16x256xf32>
    %14 = arith.addf %11, %13 : vector<16x256xf32>
    %c0_10 = arith.constant 0 : index
    %c0_11 = arith.constant 0 : index
    %15 = vector.load %arg7[%c0_10, %c0_11] : memref<16x256xf32, #tpu.memory_space<vmem>>, vector<16x256xf32>
    tpu.vector_store %arg7[%c0_10, %c0_11], %14 {strides = array<i32>} : memref<16x256xf32, #tpu.memory_space<vmem>>, vector<16x256xf32>,
    %c0_12 = arith.constant 0 : index
    %c0_13 = arith.constant 0 : index
    %16 = vector.load %arg2[%c0_12, %c0_13] : memref<1x256xf32, #tpu.memory_space<vmem>>, vector<1x256xf32>
    %17 = vector.broadcast %16 : vector<1x256xf32> to vector<16x256xf32>
    %18 = arith.mulf %14, %17 : vector<16x256xf32>
    %cst_14 = arith.constant dense<0.000000e+00> : vector<16xf32>
    %19 = vector.multi_reduction <add>, %18, %cst_14 [1] : vector<16x256xf32> to vector<16xf32>
    %20 = vector.shape_cast %19 : vector<16xf32> to vector<16x1xf32>
    %c0_15 = arith.constant 0 : index
    %c0_16 = arith.constant 0 : index
    %c0_17 = arith.constant 0 : index
    %21 = vector.load %arg8[%c0_15, %c0_16, %c0_17] : memref<1x16x2xf32, #tpu.memory_space<vmem>>, vector<1x16x1xf32>
    %22 = vector.shape_cast %21 : vector<1x16x1xf32> to vector<16x1xf32>
    %23 = vector.shape_cast %20 : vector<16x1xf32> to vector<1x16x1xf32>
    tpu.vector_store %arg8[%c0_15, %c0_16, %c0_17], %23 {strides = array<i32>} : memref<1x16x2xf32, #tpu.memory_space<vmem>>, vector<1x16x1xf32>,
    %24 = arith.mulf %18, %14 : vector<16x256xf32>
    %cst_18 = arith.constant dense<0.000000e+00> : vector<16xf32>
    %25 = vector.multi_reduction <add>, %24, %cst_18 [1] : vector<16x256xf32> to vector<16xf32>
    %26 = vector.shape_cast %25 : vector<16xf32> to vector<16x1xf32>
    %c0_19 = arith.constant 0 : index
    %c0_20 = arith.constant 0 : index
    %c1 = arith.constant 1 : index
    %27 = vector.load %arg8[%c0_19, %c0_20, %c1] : memref<1x16x2xf32, #tpu.memory_space<vmem>>, vector<1x16x1xf32>
    %28 = vector.shape_cast %27 : vector<1x16x1xf32> to vector<16x1xf32>
    %29 = vector.shape_cast %26 : vector<16x1xf32> to vector<1x16x1xf32>
    tpu.vector_store %arg8[%c0_19, %c0_20, %c1], %29 {strides = array<i32>} : memref<1x16x2xf32, #tpu.memory_space<vmem>>, vector<1x16x1xf32>,
    return
  }
  func.func @transform_0(%arg0: i32) -> (i32, i32) {
    %c0_i32 = arith.constant 0 : i32
    %c0_i32_0 = arith.constant 0 : i32
    return %c0_i32, %arg0 : i32, i32
  }
  func.func @transform_1(%arg0: i32) -> (i32, i32) {
    %c0_i32 = arith.constant 0 : i32
    %c0_i32_0 = arith.constant 0 : i32
    %c0_i32_1 = arith.constant 0 : i32
    return %c0_i32, %c0_i32_0 : i32, i32
  }
  func.func @transform_2(%arg0: i32) -> (i32, i32) {
    %c0_i32 = arith.constant 0 : i32
    %c0_i32_0 = arith.constant 0 : i32
    %c0_i32_1 = arith.constant 0 : i32
    return %c0_i32, %c0_i32_0 : i32, i32
  }
  func.func @transform_3(%arg0: i32) -> (i32, i32) {
    %c0_i32 = arith.constant 0 : i32
    %c0_i32_0 = arith.constant 0 : i32
    %c0_i32_1 = arith.constant 0 : i32
    return %c0_i32, %c0_i32_0 : i32, i32
  }
  func.func @transform_4(%arg0: i32) -> (i32, i32) {
    %c0_i32 = arith.constant 0 : i32
    %c0_i32_0 = arith.constant 0 : i32
    %c0_i32_1 = arith.constant 0 : i32
    return %c0_i32, %c0_i32_0 : i32, i32
  }
  func.func @transform_5(%arg0: i32) -> (i32, i32) {
    %c0_i32 = arith.constant 0 : i32
    %c0_i32_0 = arith.constant 0 : i32
    %c0_i32_1 = arith.constant 0 : i32
    return %c0_i32, %c0_i32_0 : i32, i32
  }
  func.func @transform_6(%arg0: i32) -> (i32, i32) {
    %c0_i32 = arith.constant 0 : i32
    %c0_i32_0 = arith.constant 0 : i32
    return %c0_i32, %arg0 : i32, i32
  }
  func.func @transform_7(%arg0: i32) -> (i32, i32, i32) {
    %c0_i32 = arith.constant 0 : i32
    %c0_i32_0 = arith.constant 0 : i32
    %c0_i32_1 = arith.constant 0 : i32
    return %arg0, %c0_i32, %c0_i32_0 : i32, i32, i32
  }
}

module attributes {stable_mosaic.version = 11 : i64} {
  func.func @_pass4_kernel(%arg0: i32, %arg1: memref<16x256xf32, #tpu.memory_space<vmem>>, %arg2: memref<16x256xf32, #tpu.memory_space<vmem>>, %arg3: memref<16x1xf32, #tpu.memory_space<vmem>>, %arg4: memref<16x1xf32, #tpu.memory_space<vmem>>, %arg5: memref<16x256xf32, #tpu.memory_space<vmem>>) attributes {dimension_semantics = [#tpu.dimension_semantics<parallel>], iteration_bounds = array<i64: 2>, scalar_prefetch = 0 : i64, scratch_operands = 0 : i64, tpu.core_type = #tpu.core_type<tc>, window_params = [{transform_indices = @transform_0, window_bounds = array<i64: 16, 256>}, {transform_indices = @transform_1, window_bounds = array<i64: 16, 256>}, {pipeline_mode = #tpu.pipeline_mode<synchronous>, transform_indices = @transform_2, window_bounds = array<i64: 16, 1>}, {pipeline_mode = #tpu.pipeline_mode<synchronous>, transform_indices = @transform_3, window_bounds = array<i64: 16, 1>}, {transform_indices = @transform_4, window_bounds = array<i64: 16, 256>}]} {
    %c0 = arith.constant 0 : index
    %c0_0 = arith.constant 0 : index
    %0 = vector.load %arg3[%c0, %c0_0] : memref<16x1xf32, #tpu.memory_space<vmem>>, vector<16x1xf32>
    %c0_1 = arith.constant 0 : index
    %c0_2 = arith.constant 0 : index
    %1 = vector.load %arg1[%c0_1, %c0_2] : memref<16x256xf32, #tpu.memory_space<vmem>>, vector<16x256xf32>
    %2 = vector.broadcast %0 : vector<16x1xf32> to vector<16x256xf32>
    %3 = arith.mulf %2, %1 : vector<16x256xf32>
    %c0_3 = arith.constant 0 : index
    %c0_4 = arith.constant 0 : index
    %4 = vector.load %arg4[%c0_3, %c0_4] : memref<16x1xf32, #tpu.memory_space<vmem>>, vector<16x1xf32>
    %5 = vector.broadcast %4 : vector<16x1xf32> to vector<16x256xf32>
    %6 = arith.addf %3, %5 : vector<16x256xf32>
    %c0_5 = arith.constant 0 : index
    %c0_6 = arith.constant 0 : index
    %7 = vector.load %arg2[%c0_5, %c0_6] : memref<16x256xf32, #tpu.memory_space<vmem>>, vector<16x256xf32>
    %8 = arith.addf %6, %7 : vector<16x256xf32>
    %cst = arith.constant 0.000000e+00 : f32
    %9 = vector.broadcast %cst : f32 to vector<16x256xf32>
    %10 = arith.maximumf %8, %9 : vector<16x256xf32>
    %c0_7 = arith.constant 0 : index
    %c0_8 = arith.constant 0 : index
    %11 = vector.load %arg5[%c0_7, %c0_8] : memref<16x256xf32, #tpu.memory_space<vmem>>, vector<16x256xf32>
    tpu.vector_store %arg5[%c0_7, %c0_8], %10 {strides = array<i32>} : memref<16x256xf32, #tpu.memory_space<vmem>>, vector<16x256xf32>,
    return
  }
  func.func @transform_0(%arg0: i32) -> (i32, i32) {
    %c0_i32 = arith.constant 0 : i32
    %c0_i32_0 = arith.constant 0 : i32
    return %c0_i32, %arg0 : i32, i32
  }
  func.func @transform_1(%arg0: i32) -> (i32, i32) {
    %c0_i32 = arith.constant 0 : i32
    %c0_i32_0 = arith.constant 0 : i32
    return %c0_i32, %arg0 : i32, i32
  }
  func.func @transform_2(%arg0: i32) -> (i32, i32) {
    %c0_i32 = arith.constant 0 : i32
    %c0_i32_0 = arith.constant 0 : i32
    %c0_i32_1 = arith.constant 0 : i32
    return %c0_i32, %c0_i32_0 : i32, i32
  }
  func.func @transform_3(%arg0: i32) -> (i32, i32) {
    %c0_i32 = arith.constant 0 : i32
    %c0_i32_0 = arith.constant 0 : i32
    %c0_i32_1 = arith.constant 0 : i32
    return %c0_i32, %c0_i32_0 : i32, i32
  }
  func.func @transform_4(%arg0: i32) -> (i32, i32) {
    %c0_i32 = arith.constant 0 : i32
    %c0_i32_0 = arith.constant 0 : i32
    return %c0_i32, %arg0 : i32, i32
  }
}

</mosaic_0001>

<llo_original>
// kernel: residual_block_forward.5
$region0: #{residual_block_forward.5}
  #allocation0 [shape = 'u32[]', space=smem, size = 0x4, offset = 0x4, fixed_abs, tag = 'smem constant byte address 0x4 - core index']
  #allocation1 [shape = 'u32[72,128]{1,0:T(1,128)}', space=vmem, size = 0x9000, scoped, tag = 'internal scratch']
  %s0 = inlined_call_operand.vmem [shape: f32[4,512], index: 0, kind: input, shape index: {}]
  %s1 = inlined_call_operand.vmem [shape: f32[1,256], index: 1, kind: input, shape index: {}]
  %s2 = inlined_call_operand.vmem [shape: f32[9,256], index: 2, kind: input, shape index: {}]
  %s3 = inlined_call_operand.vmem [shape: f32[4,1], index: 3, kind: input, shape index: {}]
  %s4 = inlined_call_operand.vmem [shape: f32[4,1], index: 4, kind: input, shape index: {}]
  %s5 = inlined_call_operand.vmem [shape: bf16[4,36], index: 5, kind: input, shape index: {}]
  %s6 = inlined_call_operand.vmem [shape: f32[4,1], index: 6, kind: input, shape index: {}]
  %s7 = inlined_call_operand.vmem [shape: f32[4,512], index: 7, kind: output, shape index: {0}]
  %s8 = inlined_call_operand.vmem [shape: f32[2,4,2], index: 8, kind: output, shape index: {1}]
  %9 = xla_tuple %s7, %s8
  %s10 = sld [smem:[#allocation0]]
  $region69: #{residual_block_forward.5} parent=0
    _
  %s12 = ssub.s32 1, %s10
  %s13 = scalar_select 0, %s12, %s10
  loop: start=0, step=1, limit=4
  $region2: #{residual_block_forward.5} parent=0 // loop_pre_header
    _
  $region3: #{residual_block_forward.5} parent=0 // loop_header
    %s15 = sphi 0, %s19
    %p16 = scmp.ge.s32.totalorder %s15, 4
    %s25 = sphi 0, %s27
    %s28 = sphi 0, %s25
    %s29 = sphi 0, %s28
    %s45 = sphi 0, %s29
    %s49 = sphi 0, %s49
    %s51 = sphi 0, %s49
    %s52 = sphi 0, %s51
    %s66 = sphi 0, %s52
    %s70 = sphi 0, %s70
    %s72 = sphi 0, %s70
    %s73 = sphi 0, %s72
    %s87 = sphi 0, %s73
    %s91 = sphi 0, %s91
    %s93 = sphi 0, %s91
    %s94 = sphi 0, %s93
    %s108 = sphi 0, %s94
    %s112 = sphi 0, %s112
    %s114 = sphi 0, %s112
    %s115 = sphi 0, %s114
    %s129 = sphi 0, %s115
    %s133 = sphi 0, %s133
    %s135 = sphi 0, %s133
    %s136 = sphi 0, %s135
    %s150 = sphi 0, %s136
    %s154 = sphi 0, %s154
    %s156 = sphi 0, %s154
    %s157 = sphi 0, %s156
    %s171 = sphi 0, %s157
    %s177 = sphi 0, %s179
    %s180 = sphi 0, %s177
    %s181 = sphi 0, %s180
    %s197 = sphi 0, %s181
    %s203 = sphi 0, %s205
    %s206 = sphi 0, %s203
    %s207 = sphi 0, %s206
    %s223 = sphi 0, %s207
  $region4: #{residual_block_forward.5} parent=0 // loop_header_branch
    %18 = sbr.rel (%p16) target = $region8
  $region5: #{residual_block_forward.5} parent=0 // loop_body
    %s20 = ssub.s32 %s15, 1
    %s21 = ssub.s32 %s15, 2
    %s22 = sadd.s32 %s15, 1
    %s23 = ssub.s32 %s15, %s22
    %p24 = scmp.eq.s32.totalorder %s23, 0
    %s26 = sadd.s32 %s25, 1
    %s27 = scalar_select %p24, %s25, %s26
    %p30 = pneg %p24
    %p31 = scmp.eq.s32.totalorder %s15, 1
    %p32 = por %p30, %p31
    %p33 = scmp.ne.s32.totalorder %s25, %s28
    %p34 = scmp.eq.s32.totalorder %s15, 0
    %p35 = por %p33, %p34
    %p36 = scmp.ne.s32.totalorder %s25, %s28
    %p37 = scmp.eq.s32.totalorder %s20, 1
    %p38 = por %p36, %p37
    %p39 = scmp.ne.s32.totalorder %s28, %s29
    %p40 = scmp.eq.s32.totalorder %s20, 0
    %p41 = por %p39, %p40
    %p42 = scmp.ne.s32.totalorder %s28, %s29
    %p43 = scmp.eq.s32.totalorder %s21, 1
    %p44 = por %p42, %p43
    %p46 = scmp.ne.s32.totalorder %s29, %s45
    %p47 = scmp.eq.s32.totalorder %s21, 0
    %p48 = por %p46, %p47
    %s50 = sadd.s32 %s49, 1
    %p53 = scmp.eq.s32.totalorder %s15, 1
    %p54 = scmp.ne.s32.totalorder %s49, %s51
    %p55 = scmp.eq.s32.totalorder %s15, 0
    %p56 = por %p54, %p55
    %p57 = scmp.ne.s32.totalorder %s49, %s51
    %p58 = scmp.eq.s32.totalorder %s20, 1
    %p59 = por %p57, %p58
    %p60 = scmp.ne.s32.totalorder %s51, %s52
    %p61 = scmp.eq.s32.totalorder %s20, 0
    %p62 = por %p60, %p61
    %p63 = scmp.ne.s32.totalorder %s51, %s52
    %p64 = scmp.eq.s32.totalorder %s21, 1
    %p65 = por %p63, %p64
    %p67 = scmp.ne.s32.totalorder %s52, %s66
    %p68 = scmp.eq.s32.totalorder %s21, 0
    %p69 = por %p67, %p68
    %s71 = sadd.s32 %s70, 1
    %p74 = scmp.eq.s32.totalorder %s15, 1
    %p75 = scmp.ne.s32.totalorder %s70, %s72
    %p76 = scmp.eq.s32.totalorder %s15, 0
    %p77 = por %p75, %p76
    %p78 = scmp.ne.s32.totalorder %s70, %s72
    %p79 = scmp.eq.s32.totalorder %s20, 1
    %p80 = por %p78, %p79
    %p81 = scmp.ne.s32.totalorder %s72, %s73
    %p82 = scmp.eq.s32.totalorder %s20, 0
    %p83 = por %p81, %p82
    %p84 = scmp.ne.s32.totalorder %s72, %s73
    %p85 = scmp.eq.s32.totalorder %s21, 1
    %p86 = por %p84, %p85
    %p88 = scmp.ne.s32.totalorder %s73, %s87
    %p89 = scmp.eq.s32.totalorder %s21, 0
    %p90 = por %p88, %p89
    %s92 = sadd.s32 %s91, 1
    %p95 = scmp.eq.s32.totalorder %s15, 1
    %p96 = scmp.ne.s32.totalorder %s91, %s93
    %p97 = scmp.eq.s32.totalorder %s15, 0
    %p98 = por %p96, %p97
    %p99 = scmp.ne.s32.totalorder %s91, %s93
    %p100 = scmp.eq.s32.totalorder %s20, 1
    %p101 = por %p99, %p100
    %p102 = scmp.ne.s32.totalorder %s93, %s94
    %p103 = scmp.eq.s32.totalorder %s20, 0
    %p104 = por %p102, %p103
    %p105 = scmp.ne.s32.totalorder %s93, %s94
    %p106 = scmp.eq.s32.totalorder %s21, 1
    %p107 = por %p105, %p106
    %p109 = scmp.ne.s32.totalorder %s94, %s108
    %p110 = scmp.eq.s32.totalorder %s21, 0
    %p111 = por %p109, %p110
    %s113 = sadd.s32 %s112, 1
    %p116 = scmp.eq.s32.totalorder %s15, 1
    %p117 = scmp.ne.s32.totalorder %s112, %s114
    %p118 = scmp.eq.s32.totalorder %s15, 0
    %p119 = por %p117, %p118
    %p120 = scmp.ne.s32.totalorder %s112, %s114
    %p121 = scmp.eq.s32.totalorder %s20, 1
    %p122 = por %p120, %p121
    %p123 = scmp.ne.s32.totalorder %s114, %s115
    %p124 = scmp.eq.s32.totalorder %s20, 0
    %p125 = por %p123, %p124
    %p126 = scmp.ne.s32.totalorder %s114, %s115
    %p127 = scmp.eq.s32.totalorder %s21, 1
    %p128 = por %p126, %p127
    %p130 = scmp.ne.s32.totalorder %s115, %s129
    %p131 = scmp.eq.s32.totalorder %s21, 0
    %p132 = por %p130, %p131
    %s134 = sadd.s32 %s133, 1
    %p137 = scmp.eq.s32.totalorder %s15, 1
    %p138 = scmp.ne.s32.totalorder %s133, %s135
    %p139 = scmp.eq.s32.totalorder %s15, 0
    %p140 = por %p138, %p139
    %p141 = scmp.ne.s32.totalorder %s133, %s135
    %p142 = scmp.eq.s32.totalorder %s20, 1
    %p143 = por %p141, %p142
    %p144 = scmp.ne.s32.totalorder %s135, %s136
    %p145 = scmp.eq.s32.totalorder %s20, 0
    %p146 = por %p144, %p145
    %p147 = scmp.ne.s32.totalorder %s135, %s136
    %p148 = scmp.eq.s32.totalorder %s21, 1
    %p149 = por %p147, %p148
    %p151 = scmp.ne.s32.totalorder %s136, %s150
    %p152 = scmp.eq.s32.totalorder %s21, 0
    %p153 = por %p151, %p152
    %s155 = sadd.s32 %s154, 1
    %p158 = scmp.eq.s32.totalorder %s15, 1
    %p159 = scmp.ne.s32.totalorder %s154, %s156
    %p160 = scmp.eq.s32.totalorder %s15, 0
    %p161 = por %p159, %p160
    %p162 = scmp.ne.s32.totalorder %s154, %s156
    %p163 = scmp.eq.s32.totalorder %s20, 1
    %p164 = por %p162, %p163
    %p165 = scmp.ne.s32.totalorder %s156, %s157
    %p166 = scmp.eq.s32.totalorder %s20, 0
    %p167 = por %p165, %p166
    %p168 = scmp.ne.s32.totalorder %s156, %s157
    %p169 = scmp.eq.s32.totalorder %s21, 1
    %p170 = por %p168, %p169
    %p172 = scmp.ne.s32.totalorder %s157, %s171
    %p173 = scmp.eq.s32.totalorder %s21, 0
    %p174 = por %p172, %p173
    %s175 = ssub.s32 %s15, %s22
    %p176 = scmp.eq.s32.totalorder %s175, 0
    %s178 = sadd.s32 %s177, 1
    %s179 = scalar_select %p176, %s177, %s178
    %p182 = pneg %p176
    %p183 = scmp.eq.s32.totalorder %s15, 1
    %p184 = por %p182, %p183
    %p185 = scmp.ne.s32.totalorder %s177, %s180
    %p186 = scmp.eq.s32.totalorder %s15, 0
    %p187 = por %p185, %p186
    %p188 = scmp.ne.s32.totalorder %s177, %s180
    %p189 = scmp.eq.s32.totalorder %s20, 1
    %p190 = por %p188, %p189
    %p191 = scmp.ne.s32.totalorder %s180, %s181
    %p192 = scmp.eq.s32.totalorder %s20, 0
    %p193 = por %p191, %p192
    %p194 = scmp.ne.s32.totalorder %s180, %s181
    %p195 = scmp.eq.s32.totalorder %s21, 1
    %p196 = por %p194, %p195
    %p198 = scmp.ne.s32.totalorder %s181, %s197
    %p199 = scmp.eq.s32.totalorder %s21, 0
    %p200 = por %p198, %p199
    %s201 = ssub.s32 %s15, %s22
    %p202 = scmp.eq.s32.totalorder %s201, 0
    %s204 = sadd.s32 %s203, 1
    %s205 = scalar_select %p202, %s203, %s204
    %p208 = pneg %p202
    %p209 = scmp.eq.s32.totalorder %s15, 1
    %p210 = por %p208, %p209
    %p211 = scmp.ne.s32.totalorder %s203, %s206
    %p212 = scmp.eq.s32.totalorder %s15, 0
    %p213 = por %p211, %p212
    %p214 = scmp.ne.s32.totalorder %s203, %s206
    %p215 = scmp.eq.s32.totalorder %s20, 1
    %p216 = por %p214, %p215
    %p217 = scmp.ne.s32.totalorder %s206, %s207
    %p218 = scmp.eq.s32.totalorder %s20, 0
    %p219 = por %p217, %p218
    %p220 = scmp.ne.s32.totalorder %s206, %s207
    %p221 = scmp.eq.s32.totalorder %s21, 1
    %p222 = por %p220, %p221
    %p224 = scmp.ne.s32.totalorder %s207, %s223
    %p225 = scmp.eq.s32.totalorder %s21, 0
    %p226 = por %p224, %p225
    %p227 = scmp.le.s32.totalorder 1, %s15
    %p228 = scmp.lt.s32.totalorder %s15, 3
    %p229 = pnand %p227, %p228
    %p230 = pneg %p229
    // Predicated region
    $region9: #{residual_block_forward.5} parent=5 // pred_check
      _
    $region10: #{residual_block_forward.5} parent=5 // pred_check_branch
      %232 = sbr.rel (%p229) target = $region12
    $region11: #{residual_block_forward.5} parent=5 // pred_region
      %s233 = ssub.s32 %s15, 1
      // Predicated region
      $region13: #{residual_block_forward.5} parent=11 // pred_check
        %p234 = pneg %p62
      $region14: #{residual_block_forward.5} parent=11 // pred_check_branch
        %236 = sbr.rel (%p234) target = $region16
      $region15: #{residual_block_forward.5} parent=11 // pred_region
        _
      $region16: #{residual_block_forward.5} parent=11 // pred_fallthru
        _
      // Predicated region
      $region17: #{residual_block_forward.5} parent=11 // pred_check
        %p237 = pneg %p83
      $region18: #{residual_block_forward.5} parent=11 // pred_check_branch
        %239 = sbr.rel (%p237) target = $region20
      $region19: #{residual_block_forward.5} parent=11 // pred_region
        _
      $region20: #{residual_block_forward.5} parent=11 // pred_fallthru
        _
      // Predicated region
      $region21: #{residual_block_forward.5} parent=11 // pred_check
        %p240 = pneg %p104
      $region22: #{residual_block_forward.5} parent=11 // pred_check_branch
        %242 = sbr.rel (%p240) target = $region24
      $region23: #{residual_block_forward.5} parent=11 // pred_region
        _
      $region24: #{residual_block_forward.5} parent=11 // pred_fallthru
        _
      // Predicated region
      $region25: #{residual_block_forward.5} parent=11 // pred_check
        %p243 = pneg %p125
      $region26: #{residual_block_forward.5} parent=11 // pred_check_branch
        %245 = sbr.rel (%p243) target = $region28
      $region27: #{residual_block_forward.5} parent=11 // pred_region
        _
      $region28: #{residual_block_forward.5} parent=11 // pred_fallthru
        _
      // Predicated region
      $region29: #{residual_block_forward.5} parent=11 // pred_check
        %p246 = pneg %p146
      $region30: #{residual_block_forward.5} parent=11 // pred_check_branch
        %248 = sbr.rel (%p246) target = $region32
      $region31: #{residual_block_forward.5} parent=11 // pred_region
        _
      $region32: #{residual_block_forward.5} parent=11 // pred_fallthru
        _
      // Predicated region
      $region33: #{residual_block_forward.5} parent=11 // pred_check
        %p249 = pneg %p167
      $region34: #{residual_block_forward.5} parent=11 // pred_check_branch
        %251 = sbr.rel (%p249) target = $region36
      $region35: #{residual_block_forward.5} parent=11 // pred_region
        _
      $region36: #{residual_block_forward.5} parent=11 // pred_fallthru
        _
    $region12: #{residual_block_forward.5} parent=5 // pred_fallthru
      _
    %p252 = scmp.lt.s32.totalorder %s15, 2
    // Predicated region
    $region37: #{residual_block_forward.5} parent=5 // pred_check
      %p253 = pneg %p252
    $region38: #{residual_block_forward.5} parent=5 // pred_check_branch
      %255 = sbr.rel (%p253) target = $region40
    $region39: #{residual_block_forward.5} parent=5 // pred_region
      // Predicated region
      $region41: #{residual_block_forward.5} parent=39 // pred_check
        %p256 = pneg %p35
      $region42: #{residual_block_forward.5} parent=39 // pred_check_branch
        %258 = sbr.rel (%p256) target = $region44
      $region43: #{residual_block_forward.5} parent=39 // pred_region
        %s259 = smul.u32 2, %s15
        %p260 = scmp.lt.s32.totalorder %s259, 3
        %s261 = scalar_select %p260, %s259, 3
        %s262 = smul.addr %s261, 4
        %s263 = scalar_lea.vmem %s0, %s262
        %s264 = smul.u32 2, %s15
      $region44: #{residual_block_forward.5} parent=39 // pred_fallthru
        _
    $region40: #{residual_block_forward.5} parent=5 // pred_fallthru
      _
    %p265 = scmp.le.s32.totalorder 1, %s15
    %p266 = scmp.lt.s32.totalorder %s15, 3
    %p267 = pnand %p265, %p266
    %p268 = pneg %p267
    // Predicated region
    $region45: #{residual_block_forward.5} parent=5 // pred_check
      _
    $region46: #{residual_block_forward.5} parent=5 // pred_check_branch
      %270 = sbr.rel (%p267) target = $region48
    $region47: #{residual_block_forward.5} parent=5 // pred_region
      %s271 = ssub.s32 %s15, 1
      %s272 = smul.u32 2, %s20
      %p273 = scmp.lt.s32.totalorder %s272, 3
      %s274 = scalar_select %p273, %s272, 3
      %s275 = smul.addr %s274, 4
      %s276 = scalar_lea.vmem %s0, %s275
      %p277 = pneg %p41
      %p278 = pneg %p38
      %p279 = pneg %p62
      %p280 = pneg %p59
      %p281 = pneg %p83
      %p282 = pneg %p80
      %p283 = pneg %p104
      %p284 = pneg %p101
      %p285 = pneg %p125
      %p286 = pneg %p122
      %p287 = pneg %p146
      %p288 = pneg %p143
      %p289 = pneg %p167
      %p290 = pneg %p164
      %p291 = pneg %p193
      %p292 = pneg %p190
      %s293 = smul.u32 2, %s20
      %p294 = scmp.lt.s32.totalorder %s293, 3
      %s295 = scalar_select %p294, %s293, 3
      %s296 = smul.addr %s295, 4
      %s297 = scalar_lea.vmem %s7, %s296
      %p298 = pneg %p219
      %p299 = pneg %p216
      %p300 = scmp.lt.s32.totalorder %s20, 1
      %s301 = scalar_select %p300, %s20, 1
      %s302 = smul.addr %s301, 4
      %s303 = scalar_lea.vmem %s8, %s302
      %s304 = smul.u32 2, %s20
      %p305 = scmp.lt.s32.totalorder %s304, 3
      %s306 = scalar_select %p305, %s304, 3
      %s307 = smul.addr %s306, 4
      %s308 = scalar_lea.vmem %s0, %s307
      %s309 = smul.u32 2, %s20
      %s310 = smul.u32 2, %s20
      %p311 = scmp.lt.s32.totalorder %s310, 3
      %s312 = scalar_select %p311, %s310, 3
      %s313 = smul.addr %s312, 4
      %s314 = scalar_lea.vmem %s7, %s313
      %s315 = smul.u32 2, %s20
      %p316 = scmp.lt.s32.totalorder %s20, 1
      %s317 = scalar_select %p316, %s20, 1
      %s318 = smul.addr %s317, 4
      %s319 = scalar_lea.vmem %s8, %s318
      %v321 = vld [vmem:[%s3] sm:$0xf]
      %v322 = vld [vmem:[%s308] sm:$0xff]
      %324 = vset.pattern.permute.xlu0 0
      %325 = vperm.xlu0 %324, %v321
      %v326 = vpop.permute.xlu0 %325
      %329 = vst [vmem:[#allocation1] ss:$2 sm:$0xff] %v322
      %v330 = vld.sshfl [vmem:[#allocation1] sm:$0xff pattern:$0x75316420]
      %v331 = vld.sshfl [vmem:[#allocation1 + $0x8] sm:$0xff pattern:$0x75316420]
      %v334 = vmul.f32 %v326, %v330
      %v335 = vmul.f32 %v326, %v331
      %v336 = vld [vmem:[%s4] sm:$0xf]
      %338 = vset.pattern.permute.xlu0 0
      %339 = vperm.xlu0 %338, %v336
      %v340 = vpop.permute.xlu0 %339
      %v342 = vadd.f32 %v334, %v340
      %v343 = vadd.f32 %v335, %v340
      %v344 = vmax.f32 %v342, 0.0
      %v345 = vmax.f32 %v343, 0.0
      %v346 = vld [vmem:[%s2] sm:$0xff]
      %v347 = vld [vmem:[%s2 + $0x8] sm:$0xff]
      %v348 = vld [vmem:[%s2 + $0x10] sm:$0x1]
      %v349 = vld [vmem:[%s2 + $0x18] sm:$0x1]
      %350 = vrot.lane.b32.xlu0 %v344, 17
      %v351 = vpop.permute.xlu0 %350
      %352 = vrot.lane.b32.xlu0 %v345, 17
      %v353 = vpop.permute.xlu0 %352
      %v354 = vlaneseq
      %v355 = vand.u32 %v354, 127
      %vm356 = vcmp.lt.s32.totalorder %v355, 17
      %v357 = vsel %vm356, %v351, %v353
      %v358 = vsel %vm356, %v353, %v351
      %v359 = vperm.slane %v346, 0
      %v360 = vperm.slane %v347, 0
      %v361 = vmul.f32 %v358, %v359
      %v362 = vmul.f32 %v357, %v360
      %363 = vrot.lane.b32.xlu0 %v344, 16
      %v364 = vpop.permute.xlu0 %363
      %365 = vrot.lane.b32.xlu0 %v345, 16
      %v366 = vpop.permute.xlu0 %365
      %vm367 = vcmp.lt.s32.totalorder %v355, 16
      %v368 = vsel %vm367, %v364, %v366
      %v369 = vsel %vm367, %v366, %v364
      %v370 = vperm.slane %v346, 1
      %v371 = vperm.slane %v347, 1
      %v372 = vmul.f32 %v369, %v370
      %v373 = vmul.f32 %v368, %v371
      %374 = vrot.lane.b32.xlu0 %v344, 15
      %v375 = vpop.permute.xlu0 %374
      %376 = vrot.lane.b32.xlu0 %v345, 15
      %v377 = vpop.permute.xlu0 %376
      %vm378 = vcmp.lt.s32.totalorder %v355, 15
      %v379 = vsel %vm378, %v375, %v377
      %v380 = vsel %vm378, %v377, %v375
      %v381 = vperm.slane %v346, 2
      %v382 = vperm.slane %v347, 2
      %v383 = vmul.f32 %v380, %v381
      %v384 = vmul.f32 %v379, %v382
      %385 = vrot.lane.b32.xlu0 %v344, 1
      %v386 = vpop.permute.xlu0 %385
      %387 = vrot.lane.b32.xlu0 %v345, 1
      %v388 = vpop.permute.xlu0 %387
      %vm389 = vcmp.lt.s32.totalorder %v355, 1
      %v390 = vsel %vm389, %v386, %v388
      %v391 = vsel %vm389, %v388, %v386
      %v392 = vperm.slane %v346, 3
      %v393 = vperm.slane %v347, 3
      %v394 = vmul.f32 %v391, %v392
      %v395 = vmul.f32 %v390, %v393
      %v396 = vperm.slane %v346, 4
      %v397 = vperm.slane %v347, 4
      %v398 = vmul.f32 %v344, %v396
      %v399 = vmul.f32 %v345, %v397
      %400 = vrot.lane.b32.xlu0 %v344, 127
      %v401 = vpop.permute.xlu0 %400
      %402 = vrot.lane.b32.xlu0 %v345, 127
      %v403 = vpop.permute.xlu0 %402
      %vm404 = vcmp.lt.s32.totalorder %v355, 127
      %v405 = vsel %vm404, %v401, %v403
      %v406 = vsel %vm404, %v403, %v401
      %v407 = vperm.slane %v346, 5
      %v408 = vperm.slane %v347, 5
      %v409 = vmul.f32 %v405, %v407
      %v410 = vmul.f32 %v406, %v408
      %411 = vrot.lane.b32.xlu0 %v344, 113
      %v412 = vpop.permute.xlu0 %411
      %413 = vrot.lane.b32.xlu0 %v345, 113
      %v414 = vpop.permute.xlu0 %413
      %vm415 = vcmp.lt.s32.totalorder %v355, 113
      %v416 = vsel %vm415, %v412, %v414
      %v417 = vsel %vm415, %v414, %v412
      %v418 = vperm.slane %v346, 6
      %v419 = vperm.slane %v347, 6
      %v420 = vmul.f32 %v416, %v418
      %v421 = vmul.f32 %v417, %v419
      %422 = vrot.lane.b32.xlu0 %v344, 112
      %v423 = vpop.permute.xlu0 %422
      %424 = vrot.lane.b32.xlu0 %v345, 112
      %v425 = vpop.permute.xlu0 %424
      %vm426 = vcmp.lt.s32.totalorder %v355, 112
      %v427 = vsel %vm426, %v423, %v425
      %v428 = vsel %vm426, %v425, %v423
      %v429 = vperm.slane %v346, 7
      %v430 = vperm.slane %v347, 7
      %v431 = vmul.f32 %v427, %v429
      %v432 = vmul.f32 %v428, %v430
      %433 = vrot.lane.b32.xlu0 %v344, 111
      %v434 = vpop.permute.xlu0 %433
      %435 = vrot.lane.b32.xlu0 %v345, 111
      %v436 = vpop.permute.xlu0 %435
      %vm437 = vcmp.lt.s32.totalorder %v355, 111
      %v438 = vsel %vm437, %v434, %v436
      %v439 = vsel %vm437, %v436, %v434
      %v440 = vperm.slane %v348, 0
      %v441 = vperm.slane %v349, 0
      %v442 = vmul.f32 %v438, %v440
      %v443 = vmul.f32 %v439, %v441
      %v446 = vrot.slane %v372, 4
      %v447 = vrot.slane %v373, 4
      %v452 = vrot.slane %v394, 4
      %v453 = vrot.slane %v395, 4
      %v458 = vrot.slane %v409, 4
      %v459 = vrot.slane %v410, 4
      %v464 = vrot.slane %v431, 4
      %v465 = vrot.slane %v432, 4
      %vm468 = vcmask 1043456
      %v469 = vsel %vm468, %v361, %v446
      %v470 = vsel %vm468, %v362, %v447
      %v471 = vsel %vm468, %v383, %v452
      %v472 = vsel %vm468, %v384, %v453
      %v473 = vsel %vm468, %v398, %v458
      %v474 = vsel %vm468, %v399, %v459
      %v475 = vsel %vm468, %v420, %v464
      %v476 = vsel %vm468, %v421, %v465
      %v477 = vpack.c.bf16 %v471, %v469
      %v478 = vpack.c.bf16 %v472, %v470
      %v479 = vpack.c.bf16 %v475, %v473
      %v480 = vpack.c.bf16 %v476, %v474
      %v481 = vpack.c.bf16 %v442, %v442
      %v482 = vpack.c.bf16 %v443, %v443
      %v483 = vld [vmem:[%s5] sm:$0x3]
      %v484 = vld [vmem:[%s6] sm:$0xf]
      %486 = vset.pattern.permute.xlu0 0
      %487 = vperm.xlu0 %486, %v484
      %v488 = vpop.permute.xlu0 %487
      %vm490 = vcmask 293888
      %v492 = vsel %vm490, %v483, 0
      %vm494 = vcmask 1041408
      %v496 = vsel %vm494, %v481, 0
      %v499 = vsel %vm494, %v482, 0
      %501 = vmatpush.bf16.msra.mxu0 0
      %502 = vmatpush.bf16.msra.mxu0 0
      %503 = vmatpush.bf16.msra.mxu0 0
      %504 = vmatpush.bf16.msra.mxu0 0
      %505 = vmatpush.bf16.msra.mxu0 0
      %506 = vmatpush.bf16.msra.mxu0 %v496
      %507 = vmatpush.bf16.msra.mxu0 %v479
      %508 = vmatpush.bf16.msra.mxu0 %v477
      %509 = vmatmul.bf16.gmra.mxu0 %v492
      %v510 = vpop.f32.mrf.mxu0
      %v511 = vadd.f32 %v488, %v510
      %v512 = vpop.f32.mrf.mxu0
      %513 = vdwg.mxu0
      %514 = vmatpush.bf16.msra.mxu0 0
      %515 = vmatpush.bf16.msra.mxu0 0
      %516 = vmatpush.bf16.msra.mxu0 0
      %517 = vmatpush.bf16.msra.mxu0 0
      %518 = vmatpush.bf16.msra.mxu0 0
      %519 = vmatpush.bf16.msra.mxu0 %v499
      %520 = vmatpush.bf16.msra.mxu0 %v480
      %521 = vmatpush.bf16.msra.mxu0 %v478
      %522 = vmatmul.bf16.gmra.mxu0 %v492
      %v523 = vpop.f32.mrf.mxu0
      %v524 = vadd.f32 %v488, %v523
      %v525 = vpop.f32.mrf.mxu0
      %526 = vdwg.mxu0
      %v529 = vrot.slane %v524, 4
      %v530 = vsel %vm468, %v511, %v529
      %532 = vst [vmem:[%s314] sm:$0xff] %v530
      %v533 = vld [vmem:[%s1] sm:$0x3]
      %v535 = vperm.slane %v533, 0
      %v536 = vperm.slane %v533, 1
      %v539 = vmul.f32 %v511, %v535
      %v540 = vmul.f32 %v524, %v536
      %v541 = vsel %vm468, %v539, 0.0
      %v542 = vsel %vm468, %v540, 0.0
      %v543 = vadd.f32 %v541, %v542
      %544 = vadd.xlane.f32.xlu0 %v543
      %v545 = vpop.xlane.xlu0 %544
      %vm546 = vcmask 3072
      %547 = vst.msk [vmem:[%s319] sm:$0xf] %vm546, %v545
      %v548 = vmul.f32 %v539, %v511
      %v549 = vmul.f32 %v540, %v524
      %v550 = vsel %vm468, %v548, 0.0
      %v551 = vsel %vm468, %v549, 0.0
      %v552 = vadd.f32 %v550, %v551
      %553 = vadd.xlane.f32.xlu0 %v552
      %v554 = vpop.xlane.xlu0 %553
      %vm555 = vcmask 11272
      %556 = vst.msk [vmem:[%s319] sm:$0xf] %vm555, %v554
      %s557 = smul.u32 2, %s20
      %p558 = scmp.lt.s32.totalorder %s557, 3
      %s559 = scalar_select %p558, %s557, 3
      %s560 = smul.addr %s559, 4
      %s561 = scalar_lea.vmem %s7, %s560
      %p562 = scmp.lt.s32.totalorder %s20, 1
      %s563 = scalar_select %p562, %s20, 1
      %s564 = smul.addr %s563, 4
      %s565 = scalar_lea.vmem %s8, %s564
      // Predicated region
      $region49: #{residual_block_forward.5} parent=47 // pred_check
        %p566 = pneg %p190
      $region50: #{residual_block_forward.5} parent=47 // pred_check_branch
        %568 = sbr.rel (%p566) target = $region52
      $region51: #{residual_block_forward.5} parent=47 // pred_region
        %s569 = smul.u32 2, %s20
      $region52: #{residual_block_forward.5} parent=47 // pred_fallthru
        _
      // Predicated region
      $region53: #{residual_block_forward.5} parent=47 // pred_check
        %p570 = pneg %p216
      $region54: #{residual_block_forward.5} parent=47 // pred_check_branch
        %572 = sbr.rel (%p570) target = $region56
      $region55: #{residual_block_forward.5} parent=47 // pred_region
        _
      $region56: #{residual_block_forward.5} parent=47 // pred_fallthru
        _
    $region48: #{residual_block_forward.5} parent=5 // pred_fallthru
      _
    %p573 = scmp.le.s32.totalorder 2, %s15
    // Predicated region
    $region57: #{residual_block_forward.5} parent=5 // pred_check
      %p574 = pneg %p573
    $region58: #{residual_block_forward.5} parent=5 // pred_check_branch
      %576 = sbr.rel (%p574) target = $region60
    $region59: #{residual_block_forward.5} parent=5 // pred_region
      %s577 = ssub.s32 %s15, 2
      // Predicated region
      $region61: #{residual_block_forward.5} parent=59 // pred_check
        %p578 = pneg %p196
      $region62: #{residual_block_forward.5} parent=59 // pred_check_branch
        %580 = sbr.rel (%p578) target = $region64
      $region63: #{residual_block_forward.5} parent=59 // pred_region
        %s581 = smul.u32 2, %s21
        %p582 = scmp.lt.s32.totalorder %s581, 3
        %s583 = scalar_select %p582, %s581, 3
        %s584 = smul.addr %s583, 4
        %s585 = scalar_lea.vmem %s7, %s584
      $region64: #{residual_block_forward.5} parent=59 // pred_fallthru
        _
      // Predicated region
      $region65: #{residual_block_forward.5} parent=59 // pred_check
        %p586 = pneg %p222
      $region66: #{residual_block_forward.5} parent=59 // pred_check_branch
        %588 = sbr.rel (%p586) target = $region68
      $region67: #{residual_block_forward.5} parent=59 // pred_region
        %p589 = scmp.lt.s32.totalorder %s21, 1
        %s590 = scalar_select %p589, %s21, 1
        %s591 = smul.addr %s590, 4
        %s592 = scalar_lea.vmem %s8, %s591
      $region68: #{residual_block_forward.5} parent=59 // pred_fallthru
        _
    $region60: #{residual_block_forward.5} parent=5 // pred_fallthru
      _
  $region6: #{residual_block_forward.5} parent=0 // loop_footer
    %s19 = sadd.s32 1, %s15
  $region7: #{residual_block_forward.5} parent=0 // loop_footer_branch
    %14 = sbr.rel target = $region3
  $region8: #{residual_block_forward.5} parent=0 // loop_exit
    _

// kernel: residual_block_forward.6
$region0: #{residual_block_forward.6}
  #allocation0 [shape = 'u32[]', space=smem, size = 0x4, offset = 0x4, fixed_abs, tag = 'smem constant byte address 0x4 - core index']
  #allocation1 [shape = 'u32[72,128]{1,0:T(1,128)}', space=vmem, size = 0x9000, scoped, tag = 'internal scratch']
  %s0 = inlined_call_operand.vmem [shape: f32[4,512], index: 0, kind: input, shape index: {}]
  %s1 = inlined_call_operand.vmem [shape: f32[1,256], index: 1, kind: input, shape index: {}]
  %s2 = inlined_call_operand.vmem [shape: f32[4,1], index: 2, kind: input, shape index: {}]
  %s3 = inlined_call_operand.vmem [shape: f32[4,1], index: 3, kind: input, shape index: {}]
  %s4 = inlined_call_operand.vmem [shape: bf16[16,4], index: 4, kind: input, shape index: {}]
  %s5 = inlined_call_operand.vmem [shape: f32[16,1], index: 5, kind: input, shape index: {}]
  %s6 = inlined_call_operand.vmem [shape: f32[16,512], index: 6, kind: output, shape index: {0}]
  %s7 = inlined_call_operand.vmem [shape: f32[2,16,2], index: 7, kind: output, shape index: {1}]
  %8 = xla_tuple %s6, %s7
  %s9 = sld [smem:[#allocation0]]
  $region84: #{residual_block_forward.6} parent=0
    _
  %s11 = ssub.s32 1, %s9
  %s12 = scalar_select 0, %s11, %s9
  $region1: #{residual_block_forward.6} parent=0
    #allocation2 [shape = 'u8[32768]{0}', space=vmem, size = 0x8000, scoped, tag = 'output window, operand 0']
    loop: start=0, step=1, limit=4
    $region2: #{residual_block_forward.6} parent=1 // loop_pre_header
      _
    $region3: #{residual_block_forward.6} parent=1 // loop_header
      %s14 = sphi 0, %s18
      %p15 = scmp.ge.s32.totalorder %s14, 4
      %s24 = sphi 0, %s26
      %s27 = sphi 0, %s24
      %s28 = sphi 0, %s27
      %s44 = sphi 0, %s28
      %s48 = sphi 0, %s48
      %s50 = sphi 0, %s48
      %s51 = sphi 0, %s50
      %s65 = sphi 0, %s51
      %s69 = sphi 0, %s69
      %s71 = sphi 0, %s69
      %s72 = sphi 0, %s71
      %s86 = sphi 0, %s72
      %s90 = sphi 0, %s90
      %s92 = sphi 0, %s90
      %s93 = sphi 0, %s92
      %s107 = sphi 0, %s93
      %s111 = sphi 0, %s111
      %s113 = sphi 0, %s111
      %s114 = sphi 0, %s113
      %s128 = sphi 0, %s114
      %s132 = sphi 0, %s132
      %s134 = sphi 0, %s132
      %s135 = sphi 0, %s134
      %s149 = sphi 0, %s135
      %s155 = sphi 0, %s157
      %s158 = sphi 0, %s155
      %s159 = sphi 0, %s158
      %s175 = sphi 0, %s159
      %s181 = sphi 0, %s183
      %s184 = sphi 0, %s181
      %s185 = sphi 0, %s184
      %s201 = sphi 0, %s185
    $region4: #{residual_block_forward.6} parent=1 // loop_header_branch
      %17 = sbr.rel (%p15) target = $region8
    $region5: #{residual_block_forward.6} parent=1 // loop_body
      %s19 = ssub.s32 %s14, 1
      %s20 = ssub.s32 %s14, 2
      %s21 = sadd.s32 %s14, 1
      %s22 = ssub.s32 %s14, %s21
      %p23 = scmp.eq.s32.totalorder %s22, 0
      %s25 = sadd.s32 %s24, 1
      %s26 = scalar_select %p23, %s24, %s25
      %p29 = pneg %p23
      %p30 = scmp.eq.s32.totalorder %s14, 1
      %p31 = por %p29, %p30
      %p32 = scmp.ne.s32.totalorder %s24, %s27
      %p33 = scmp.eq.s32.totalorder %s14, 0
      %p34 = por %p32, %p33
      %p35 = scmp.ne.s32.totalorder %s24, %s27
      %p36 = scmp.eq.s32.totalorder %s19, 1
      %p37 = por %p35, %p36
      %p38 = scmp.ne.s32.totalorder %s27, %s28
      %p39 = scmp.eq.s32.totalorder %s19, 0
      %p40 = por %p38, %p39
      %p41 = scmp.ne.s32.totalorder %s27, %s28
      %p42 = scmp.eq.s32.totalorder %s20, 1
      %p43 = por %p41, %p42
      %p45 = scmp.ne.s32.totalorder %s28, %s44
      %p46 = scmp.eq.s32.totalorder %s20, 0
      %p47 = por %p45, %p46
      %s49 = sadd.s32 %s48, 1
      %p52 = scmp.eq.s32.totalorder %s14, 1
      %p53 = scmp.ne.s32.totalorder %s48, %s50
      %p54 = scmp.eq.s32.totalorder %s14, 0
      %p55 = por %p53, %p54
      %p56 = scmp.ne.s32.totalorder %s48, %s50
      %p57 = scmp.eq.s32.totalorder %s19, 1
      %p58 = por %p56, %p57
      %p59 = scmp.ne.s32.totalorder %s50, %s51
      %p60 = scmp.eq.s32.totalorder %s19, 0
      %p61 = por %p59, %p60
      %p62 = scmp.ne.s32.totalorder %s50, %s51
      %p63 = scmp.eq.s32.totalorder %s20, 1
      %p64 = por %p62, %p63
      %p66 = scmp.ne.s32.totalorder %s51, %s65
      %p67 = scmp.eq.s32.totalorder %s20, 0
      %p68 = por %p66, %p67
      %s70 = sadd.s32 %s69, 1
      %p73 = scmp.eq.s32.totalorder %s14, 1
      %p74 = scmp.ne.s32.totalorder %s69, %s71
      %p75 = scmp.eq.s32.totalorder %s14, 0
      %p76 = por %p74, %p75
      %p77 = scmp.ne.s32.totalorder %s69, %s71
      %p78 = scmp.eq.s32.totalorder %s19, 1
      %p79 = por %p77, %p78
      %p80 = scmp.ne.s32.totalorder %s71, %s72
      %p81 = scmp.eq.s32.totalorder %s19, 0
      %p82 = por %p80, %p81
      %p83 = scmp.ne.s32.totalorder %s71, %s72
      %p84 = scmp.eq.s32.totalorder %s20, 1
      %p85 = por %p83, %p84
      %p87 = scmp.ne.s32.totalorder %s72, %s86
      %p88 = scmp.eq.s32.totalorder %s20, 0
      %p89 = por %p87, %p88
      %s91 = sadd.s32 %s90, 1
      %p94 = scmp.eq.s32.totalorder %s14, 1
      %p95 = scmp.ne.s32.totalorder %s90, %s92
      %p96 = scmp.eq.s32.totalorder %s14, 0
      %p97 = por %p95, %p96
      %p98 = scmp.ne.s32.totalorder %s90, %s92
      %p99 = scmp.eq.s32.totalorder %s19, 1
      %p100 = por %p98, %p99
      %p101 = scmp.ne.s32.totalorder %s92, %s93
      %p102 = scmp.eq.s32.totalorder %s19, 0
      %p103 = por %p101, %p102
      %p104 = scmp.ne.s32.totalorder %s92, %s93
      %p105 = scmp.eq.s32.totalorder %s20, 1
      %p106 = por %p104, %p105
      %p108 = scmp.ne.s32.totalorder %s93, %s107
      %p109 = scmp.eq.s32.totalorder %s20, 0
      %p110 = por %p108, %p109
      %s112 = sadd.s32 %s111, 1
      %p115 = scmp.eq.s32.totalorder %s14, 1
      %p116 = scmp.ne.s32.totalorder %s111, %s113
      %p117 = scmp.eq.s32.totalorder %s14, 0
      %p118 = por %p116, %p117
      %p119 = scmp.ne.s32.totalorder %s111, %s113
      %p120 = scmp.eq.s32.totalorder %s19, 1
      %p121 = por %p119, %p120
      %p122 = scmp.ne.s32.totalorder %s113, %s114
      %p123 = scmp.eq.s32.totalorder %s19, 0
      %p124 = por %p122, %p123
      %p125 = scmp.ne.s32.totalorder %s113, %s114
      %p126 = scmp.eq.s32.totalorder %s20, 1
      %p127 = por %p125, %p126
      %p129 = scmp.ne.s32.totalorder %s114, %s128
      %p130 = scmp.eq.s32.totalorder %s20, 0
      %p131 = por %p129, %p130
      %s133 = sadd.s32 %s132, 1
      %p136 = scmp.eq.s32.totalorder %s14, 1
      %p137 = scmp.ne.s32.totalorder %s132, %s134
      %p138 = scmp.eq.s32.totalorder %s14, 0
      %p139 = por %p137, %p138
      %p140 = scmp.ne.s32.totalorder %s132, %s134
      %p141 = scmp.eq.s32.totalorder %s19, 1
      %p142 = por %p140, %p141
      %p143 = scmp.ne.s32.totalorder %s134, %s135
      %p144 = scmp.eq.s32.totalorder %s19, 0
      %p145 = por %p143, %p144
      %p146 = scmp.ne.s32.totalorder %s134, %s135
      %p147 = scmp.eq.s32.totalorder %s20, 1
      %p148 = por %p146, %p147
      %p150 = scmp.ne.s32.totalorder %s135, %s149
      %p151 = scmp.eq.s32.totalorder %s20, 0
      %p152 = por %p150, %p151
      %s153 = ssub.s32 %s14, %s21
      %p154 = scmp.eq.s32.totalorder %s153, 0
      %s156 = sadd.s32 %s155, 1
      %s157 = scalar_select %p154, %s155, %s156
      %p160 = pneg %p154
      %p161 = scmp.eq.s32.totalorder %s14, 1
      %p162 = por %p160, %p161
      %p163 = scmp.ne.s32.totalorder %s155, %s158
      %p164 = scmp.eq.s32.totalorder %s14, 0
      %p165 = por %p163, %p164
      %p166 = scmp.ne.s32.totalorder %s155, %s158
      %p167 = scmp.eq.s32.totalorder %s19, 1
      %p168 = por %p166, %p167
      %p169 = scmp.ne.s32.totalorder %s158, %s159
      %p170 = scmp.eq.s32.totalorder %s19, 0
      %p171 = por %p169, %p170
      %p172 = scmp.ne.s32.totalorder %s158, %s159
      %p173 = scmp.eq.s32.totalorder %s20, 1
      %p174 = por %p172, %p173
      %p176 = scmp.ne.s32.totalorder %s159, %s175
      %p177 = scmp.eq.s32.totalorder %s20, 0
      %p178 = por %p176, %p177
      %s179 = ssub.s32 %s14, %s21
      %p180 = scmp.eq.s32.totalorder %s179, 0
      %s182 = sadd.s32 %s181, 1
      %s183 = scalar_select %p180, %s181, %s182
      %p186 = pneg %p180
      %p187 = scmp.eq.s32.totalorder %s14, 1
      %p188 = por %p186, %p187
      %p189 = scmp.ne.s32.totalorder %s181, %s184
      %p190 = scmp.eq.s32.totalorder %s14, 0
      %p191 = por %p189, %p190
      %p192 = scmp.ne.s32.totalorder %s181, %s184
      %p193 = scmp.eq.s32.totalorder %s19, 1
      %p194 = por %p192, %p193
      %p195 = scmp.ne.s32.totalorder %s184, %s185
      %p196 = scmp.eq.s32.totalorder %s19, 0
      %p197 = por %p195, %p196
      %p198 = scmp.ne.s32.totalorder %s184, %s185
      %p199 = scmp.eq.s32.totalorder %s20, 1
      %p200 = por %p198, %p199
      %p202 = scmp.ne.s32.totalorder %s185, %s201
      %p203 = scmp.eq.s32.totalorder %s20, 0
      %p204 = por %p202, %p203
      %p205 = scmp.le.s32.totalorder 1, %s14
      %p206 = scmp.lt.s32.totalorder %s14, 3
      %p207 = pnand %p205, %p206
      %p208 = pneg %p207
      // Predicated region
      $region9: #{residual_block_forward.6} parent=5 // pred_check
        _
      $region10: #{residual_block_forward.6} parent=5 // pred_check_branch
        %210 = sbr.rel (%p207) target = $region12
      $region11: #{residual_block_forward.6} parent=5 // pred_region
        %s211 = ssub.s32 %s14, 1
        // Predicated region
        $region13: #{residual_block_forward.6} parent=11 // pred_check
          %p212 = pneg %p61
        $region14: #{residual_block_forward.6} parent=11 // pred_check_branch
          %214 = sbr.rel (%p212) target = $region16
        $region15: #{residual_block_forward.6} parent=11 // pred_region
          _
        $region16: #{residual_block_forward.6} parent=11 // pred_fallthru
          _
        // Predicated region
        $region17: #{residual_block_forward.6} parent=11 // pred_check
          %p215 = pneg %p82
        $region18: #{residual_block_forward.6} parent=11 // pred_check_branch
          %217 = sbr.rel (%p215) target = $region20
        $region19: #{residual_block_forward.6} parent=11 // pred_region
          _
        $region20: #{residual_block_forward.6} parent=11 // pred_fallthru
          _
        // Predicated region
        $region21: #{residual_block_forward.6} parent=11 // pred_check
          %p218 = pneg %p103
        $region22: #{residual_block_forward.6} parent=11 // pred_check_branch
          %220 = sbr.rel (%p218) target = $region24
        $region23: #{residual_block_forward.6} parent=11 // pred_region
          _
        $region24: #{residual_block_forward.6} parent=11 // pred_fallthru
          _
        // Predicated region
        $region25: #{residual_block_forward.6} parent=11 // pred_check
          %p221 = pneg %p124
        $region26: #{residual_block_forward.6} parent=11 // pred_check_branch
          %223 = sbr.rel (%p221) target = $region28
        $region27: #{residual_block_forward.6} parent=11 // pred_region
          _
        $region28: #{residual_block_forward.6} parent=11 // pred_fallthru
          _
        // Predicated region
        $region29: #{residual_block_forward.6} parent=11 // pred_check
          %p224 = pneg %p145
        $region30: #{residual_block_forward.6} parent=11 // pred_check_branch
          %226 = sbr.rel (%p224) target = $region32
        $region31: #{residual_block_forward.6} parent=11 // pred_region
          _
        $region32: #{residual_block_forward.6} parent=11 // pred_fallthru
          _
      $region12: #{residual_block_forward.6} parent=5 // pred_fallthru
        _
      %p227 = scmp.lt.s32.totalorder %s14, 2
      // Predicated region
      $region33: #{residual_block_forward.6} parent=5 // pred_check
        %p228 = pneg %p227
      $region34: #{residual_block_forward.6} parent=5 // pred_check_branch
        %230 = sbr.rel (%p228) target = $region36
      $region35: #{residual_block_forward.6} parent=5 // pred_region
        // Predicated region
        $region37: #{residual_block_forward.6} parent=35 // pred_check
          %p231 = pneg %p34
        $region38: #{residual_block_forward.6} parent=35 // pred_check_branch
          %233 = sbr.rel (%p231) target = $region40
        $region39: #{residual_block_forward.6} parent=35 // pred_region
          %s234 = smul.u32 2, %s14
          %p235 = scmp.lt.s32.totalorder %s234, 3
          %s236 = scalar_select %p235, %s234, 3
          %s237 = smul.addr %s236, 4
          %s238 = scalar_lea.vmem %s0, %s237
          %s239 = smul.u32 2, %s14
        $region40: #{residual_block_forward.6} parent=35 // pred_fallthru
          _
      $region36: #{residual_block_forward.6} parent=5 // pred_fallthru
        _
      %p240 = scmp.le.s32.totalorder 1, %s14
      %p241 = scmp.lt.s32.totalorder %s14, 3
      %p242 = pnand %p240, %p241
      %p243 = pneg %p242
      // Predicated region
      $region41: #{residual_block_forward.6} parent=5 // pred_check
        _
      $region42: #{residual_block_forward.6} parent=5 // pred_check_branch
        %245 = sbr.rel (%p242) target = $region44
      $region43: #{residual_block_forward.6} parent=5 // pred_region
        %s246 = ssub.s32 %s14, 1
        %s247 = smul.u32 2, %s19
        %p248 = scmp.lt.s32.totalorder %s247, 3
        %s249 = scalar_select %p248, %s247, 3
        %s250 = smul.addr %s249, 4
        %s251 = scalar_lea.vmem %s0, %s250
        %p252 = pneg %p40
        %p253 = pneg %p37
        %p254 = pneg %p61
        %p255 = pneg %p58
        %p256 = pneg %p82
        %p257 = pneg %p79
        %p258 = pneg %p103
        %p259 = pneg %p100
        %p260 = pneg %p124
        %p261 = pneg %p121
        %p262 = pneg %p145
        %p263 = pneg %p142
        %p264 = pneg %p171
        %p265 = pneg %p168
        %s266 = sand.u32 %s158, 1
        %s267 = sand.u32 %s158, 1
        %s268 = smul.addr %s267, 32
        %s269 = scalar_lea.vmem [#allocation2], %s268
        %p270 = pneg %p197
        %p271 = pneg %p194
        %p272 = scmp.lt.s32.totalorder %s19, 1
        %s273 = scalar_select %p272, %s19, 1
        %s274 = smul.addr %s273, 2
        %s275 = smul.addr %s274, 8
        %s276 = scalar_lea.vmem %s7, %s275
        %s277 = smul.u32 2, %s19
        %p278 = scmp.lt.s32.totalorder %s277, 3
        %s279 = scalar_select %p278, %s277, 3
        %s280 = smul.addr %s279, 4
        %s281 = scalar_lea.vmem %s0, %s280
        %s282 = smul.u32 2, %s19
        %s283 = smul.u32 2, %s19
        %p284 = scmp.lt.s32.totalorder %s19, 1
        %s285 = scalar_select %p284, %s19, 1
        %s286 = smul.addr %s285, 2
        %s287 = smul.addr %s286, 8
        %s288 = scalar_lea.vmem %s7, %s287
        %v290 = vld [vmem:[%s2] sm:$0xf]
        %v291 = vld [vmem:[%s281] sm:$0xff]
        %293 = vset.pattern.permute.xlu0 0
        %294 = vperm.xlu0 %293, %v290
        %v295 = vpop.permute.xlu0 %294
        %298 = vst [vmem:[#allocation1] ss:$2 sm:$0xff] %v291
        %v299 = vld.sshfl [vmem:[#allocation1] sm:$0xff pattern:$0x75316420]
        %v300 = vld.sshfl [vmem:[#allocation1 + $0x8] sm:$0xff pattern:$0x75316420]
        %v303 = vmul.f32 %v295, %v299
        %v304 = vmul.f32 %v295, %v300
        %v305 = vld [vmem:[%s3] sm:$0xf]
        %307 = vset.pattern.permute.xlu0 0
        %308 = vperm.xlu0 %307, %v305
        %v309 = vpop.permute.xlu0 %308
        %v311 = vadd.f32 %v303, %v309
        %v312 = vadd.f32 %v304, %v309
        %v313 = vmax.f32 %v311, 0.0
        %v314 = vmax.f32 %v312, 0.0
        %v315 = vld [vmem:[%s4] sm:$0xf]
        %v316 = vld [vmem:[%s4 + $0x4] sm:$0xf]
        %v317 = vpack.c.bf16 %v313, %v313
        %v318 = vpack.c.bf16 %v314, %v314
        %v319 = vld [vmem:[%s5] sm:$0xff]
        %v320 = vld [vmem:[%s5 + $0x8] sm:$0xff]
        %322 = vset.pattern.permute.xlu0 0
        %323 = vperm.xlu0 %322, %v319
        %v324 = vpop.permute.xlu0 %323
        %327 = vset.pattern.permute.xlu0 0
        %328 = vperm.xlu0 %327, %v320
        %v329 = vpop.permute.xlu0 %328
        %v333 = vunpack.c.l.b16 %v315
        %v334 = vunpack.c.l.b16 %v316
        %v335 = vpack.c.b16 %v334, %v333
        %vm336 = vcmask 31744
        %v338 = vsel %vm336, %v335, 0
        %vm340 = vcmask 1041408
        %v342 = vsel %vm340, %v317, 0
        %v345 = vsel %vm340, %v318, 0
        %347 = vmatpush.bf16.msra.mxu0 0
        %348 = vmatpush.bf16.msra.mxu0 0
        %349 = vmatpush.bf16.msra.mxu0 0
        %350 = vmatpush.bf16.msra.mxu0 0
        %351 = vmatpush.bf16.msra.mxu0 0
        %352 = vmatpush.bf16.msra.mxu0 0
        %353 = vmatpush.bf16.msra.mxu0 0
        %354 = vmatpush.bf16.msra.mxu0 %v342
        %355 = vmatmul.bf16.gmra.mxu0 %v338
        %v356 = vpop.f32.mrf.mxu0
        %v357 = vadd.f32 %v324, %v356
        %v358 = vpop.f32.mrf.mxu0
        %v359 = vadd.f32 %v329, %v358
        %360 = vdwg.mxu0
        %361 = vmatpush.bf16.msra.mxu0 0
        %362 = vmatpush.bf16.msra.mxu0 0
        %363 = vmatpush.bf16.msra.mxu0 0
        %364 = vmatpush.bf16.msra.mxu0 0
        %365 = vmatpush.bf16.msra.mxu0 0
        %366 = vmatpush.bf16.msra.mxu0 0
        %367 = vmatpush.bf16.msra.mxu0 0
        %368 = vmatpush.bf16.msra.mxu0 %v345
        %369 = vmatmul.bf16.gmra.mxu0 %v338
        %v370 = vpop.f32.mrf.mxu0
        %v371 = vadd.f32 %v324, %v370
        %v372 = vpop.f32.mrf.mxu0
        %v373 = vadd.f32 %v329, %v372
        %374 = vdwg.mxu0
        %375 = vst [vmem:[%s269] sm:$0xff] %v357
        %376 = vst [vmem:[%s269 + $0x8] sm:$0xff] %v371
        %377 = vst [vmem:[%s269 + $0x10] sm:$0xff] %v359
        %378 = vst [vmem:[%s269 + $0x18] sm:$0xff] %v373
        %v379 = vld [vmem:[%s1] sm:$0x3]
        %v381 = vperm.slane %v379, 0
        %v382 = vperm.slane %v379, 1
        %v385 = vmul.f32 %v357, %v381
        %v386 = vmul.f32 %v371, %v382
        %v387 = vmul.f32 %v359, %v381
        %v388 = vmul.f32 %v373, %v382
        %v389 = vadd.f32 %v385, %v386
        %390 = vadd.xlane.f32.xlu0 %v389
        %v391 = vpop.xlane.xlu0 %390
        %v392 = vadd.f32 %v387, %v388
        %393 = vadd.xlane.f32.xlu0 %v392
        %v394 = vpop.xlane.xlu0 %393
        %vm395 = vcmask 7168
        %396 = vst.msk [vmem:[%s288] sm:$0xff] %vm395, %v391
        %397 = vst.msk [vmem:[%s288 + $0x8] sm:$0xff] %vm395, %v394
        %v398 = vmul.f32 %v385, %v357
        %v399 = vmul.f32 %v386, %v371
        %v400 = vmul.f32 %v387, %v359
        %v401 = vmul.f32 %v388, %v373
        %v402 = vadd.f32 %v398, %v399
        %403 = vadd.xlane.f32.xlu0 %v402
        %v404 = vpop.xlane.xlu0 %403
        %v405 = vadd.f32 %v400, %v401
        %406 = vadd.xlane.f32.xlu0 %v405
        %v407 = vpop.xlane.xlu0 %406
        %vm408 = vcmask 15368
        %409 = vst.msk [vmem:[%s288] sm:$0xff] %vm408, %v404
        %410 = vst.msk [vmem:[%s288 + $0x8] sm:$0xff] %vm408, %v407
        %s411 = sand.u32 %s158, 1
        %s412 = sand.u32 %s158, 1
        %s413 = smul.addr %s412, 32
        %s414 = scalar_lea.vmem [#allocation2], %s413
        %p415 = scmp.lt.s32.totalorder %s19, 1
        %s416 = scalar_select %p415, %s19, 1
        %s417 = smul.addr %s416, 2
        %s418 = smul.addr %s417, 8
        %s419 = scalar_lea.vmem %s7, %s418
        // Predicated region
        $region45: #{residual_block_forward.6} parent=43 // pred_check
          %p420 = pneg %p168
        $region46: #{residual_block_forward.6} parent=43 // pred_check_branch
          %422 = sbr.rel (%p420) target = $region48
        $region47: #{residual_block_forward.6} parent=43 // pred_region
          %s423 = smul.u32 2, %s19
          %s424 = smul.addr %s423, 8
          %s425 = scalar_lea.vmem %s6, %s424
          // Predicated region
          $region49: #{residual_block_forward.6} parent=47 // pred_check
            _
          $region50: #{residual_block_forward.6} parent=47 // pred_check_branch
            %427 = sbr.rel (0) target = $region52
          $region51: #{residual_block_forward.6} parent=47 // pred_region
            // Predicated region
            $region53: #{residual_block_forward.6} parent=51 // pred_check
              _
            $region54: #{residual_block_forward.6} parent=51 // pred_check_branch
              %429 = sbr.rel (0) target = $region56
            $region55: #{residual_block_forward.6} parent=51 // pred_region
              loop: start=0, step=1, limit=1
              $region57: #{residual_block_forward.6} parent=55 // loop_pre_header
                _
              $region58: #{residual_block_forward.6} parent=55 // loop_header
                %s431 = sphi 0, %s435
                %p432 = scmp.ge.s32.totalorder %s431, 1
                %s436 = sphi %s414, %s414
                %s437 = sphi %s425, %s425
              $region59: #{residual_block_forward.6} parent=55 // loop_header_branch
                %434 = sbr.rel (%p432) target = $region63
              $region60: #{residual_block_forward.6} parent=55 // loop_body
                %v438 = vld [vmem:[%s436] sm:$0xff]
                %439 = vst [vmem:[%s437] sm:$0xff] %v438
                %v440 = vld [vmem:[%s436 + $0x8] sm:$0xff]
                %441 = vst [vmem:[%s437 + $0x8] sm:$0xff] %v440
                %v442 = vld [vmem:[%s436 + $0x10] sm:$0xff]
                %443 = vst [vmem:[%s437 + $0x20] sm:$0xff] %v442
                %v444 = vld [vmem:[%s436 + $0x18] sm:$0xff]
                %445 = vst [vmem:[%s437 + $0x28] sm:$0xff] %v444
              $region61: #{residual_block_forward.6} parent=55 // loop_footer
                %s435 = sadd.s32 1, %s431
              $region62: #{residual_block_forward.6} parent=55 // loop_footer_branch
                %430 = sbr.rel target = $region58
              $region63: #{residual_block_forward.6} parent=55 // loop_exit
                _
            $region56: #{residual_block_forward.6} parent=51 // pred_fallthru
              _
            // Predicated region
            $region64: #{residual_block_forward.6} parent=51 // pred_check
              _
            $region65: #{residual_block_forward.6} parent=51 // pred_check_branch
              %447 = sbr.rel target = $region67
            $region66: #{residual_block_forward.6} parent=51 // pred_region
              _
            $region67: #{residual_block_forward.6} parent=51 // pred_fallthru
              _
          $region52: #{residual_block_forward.6} parent=47 // pred_fallthru
            _
          %448 = vnop
        $region48: #{residual_block_forward.6} parent=43 // pred_fallthru
          _
        // Predicated region
        $region68: #{residual_block_forward.6} parent=43 // pred_check
          %p449 = pneg %p194
        $region69: #{residual_block_forward.6} parent=43 // pred_check_branch
          %451 = sbr.rel (%p449) target = $region71
        $region70: #{residual_block_forward.6} parent=43 // pred_region
          _
        $region71: #{residual_block_forward.6} parent=43 // pred_fallthru
          _
      $region44: #{residual_block_forward.6} parent=5 // pred_fallthru
        _
      %p452 = scmp.le.s32.totalorder 2, %s14
      // Predicated region
      $region72: #{residual_block_forward.6} parent=5 // pred_check
        %p453 = pneg %p452
      $region73: #{residual_block_forward.6} parent=5 // pred_check_branch
        %455 = sbr.rel (%p453) target = $region75
      $region74: #{residual_block_forward.6} parent=5 // pred_region
        %s456 = ssub.s32 %s14, 2
        // Predicated region
        $region76: #{residual_block_forward.6} parent=74 // pred_check
          %p457 = pneg %p174
        $region77: #{residual_block_forward.6} parent=74 // pred_check_branch
          %459 = sbr.rel (%p457) target = $region79
        $region78: #{residual_block_forward.6} parent=74 // pred_region
          %s460 = sand.u32 %s159, 1
          %s461 = sand.u32 %s159, 1
          %s462 = smul.addr %s461, 32
          %s463 = scalar_lea.vmem [#allocation2], %s462
        $region79: #{residual_block_forward.6} parent=74 // pred_fallthru
          _
        // Predicated region
        $region80: #{residual_block_forward.6} parent=74 // pred_check
          %p464 = pneg %p200
        $region81: #{residual_block_forward.6} parent=74 // pred_check_branch
          %466 = sbr.rel (%p464) target = $region83
        $region82: #{residual_block_forward.6} parent=74 // pred_region
          %p467 = scmp.lt.s32.totalorder %s20, 1
          %s468 = scalar_select %p467, %s20, 1
          %s469 = smul.addr %s468, 2
          %s470 = smul.addr %s469, 8
          %s471 = scalar_lea.vmem %s7, %s470
        $region83: #{residual_block_forward.6} parent=74 // pred_fallthru
          _
      $region75: #{residual_block_forward.6} parent=5 // pred_fallthru
        _
    $region6: #{residual_block_forward.6} parent=1 // loop_footer
      %s18 = sadd.s32 1, %s14
    $region7: #{residual_block_forward.6} parent=1 // loop_footer_branch
      %13 = sbr.rel target = $region3
    $region8: #{residual_block_forward.6} parent=1 // loop_exit
      _

// kernel: residual_block_forward.4
$region0: #{residual_block_forward.4}
  #allocation0 [shape = 'u32[]', space=smem, size = 0x4, offset = 0x4, fixed_abs, tag = 'smem constant byte address 0x4 - core index']
  #allocation1 [shape = 'u32[72,128]{1,0:T(1,128)}', space=vmem, size = 0x9000, scoped, tag = 'internal scratch']
  %s0 = inlined_call_operand.vmem [shape: bf16[4,512], index: 0, kind: input, shape index: {}]
  %s1 = inlined_call_operand.vmem [shape: f32[1,256], index: 1, kind: input, shape index: {}]
  %s2 = inlined_call_operand.vmem [shape: bf16[4,4], index: 2, kind: input, shape index: {}]
  %s3 = inlined_call_operand.vmem [shape: f32[4,1], index: 3, kind: input, shape index: {}]
  %s4 = inlined_call_operand.vmem [shape: bf16[16,4], index: 4, kind: input, shape index: {}]
  %s5 = inlined_call_operand.vmem [shape: f32[16,1], index: 5, kind: input, shape index: {}]
  %s6 = inlined_call_operand.vmem [shape: f32[16,512], index: 6, kind: output, shape index: {0}]
  %s7 = inlined_call_operand.vmem [shape: f32[4,512], index: 7, kind: output, shape index: {1}]
  %s8 = inlined_call_operand.vmem [shape: f32[2,4,2], index: 8, kind: output, shape index: {2}]
  %9 = xla_tuple %s6, %s7, %s8
  %s10 = sld [smem:[#allocation0]]
  $region92: #{residual_block_forward.4} parent=0
    _
  %s12 = ssub.s32 1, %s10
  %s13 = scalar_select 0, %s12, %s10
  $region1: #{residual_block_forward.4} parent=0
    #allocation2 [shape = 'u8[32768]{0}', space=vmem, size = 0x8000, scoped, tag = 'output window, operand 0']
    loop: start=0, step=1, limit=4
    $region2: #{residual_block_forward.4} parent=1 // loop_pre_header
      _
    $region3: #{residual_block_forward.4} parent=1 // loop_header
      %s15 = sphi 0, %s19
      %p16 = scmp.ge.s32.totalorder %s15, 4
      %s25 = sphi 0, %s27
      %s28 = sphi 0, %s25
      %s29 = sphi 0, %s28
      %s45 = sphi 0, %s29
      %s49 = sphi 0, %s49
      %s51 = sphi 0, %s49
      %s52 = sphi 0, %s51
      %s66 = sphi 0, %s52
      %s70 = sphi 0, %s70
      %s72 = sphi 0, %s70
      %s73 = sphi 0, %s72
      %s87 = sphi 0, %s73
      %s91 = sphi 0, %s91
      %s93 = sphi 0, %s91
      %s94 = sphi 0, %s93
      %s108 = sphi 0, %s94
      %s112 = sphi 0, %s112
      %s114 = sphi 0, %s112
      %s115 = sphi 0, %s114
      %s129 = sphi 0, %s115
      %s133 = sphi 0, %s133
      %s135 = sphi 0, %s133
      %s136 = sphi 0, %s135
      %s150 = sphi 0, %s136
      %s156 = sphi 0, %s158
      %s159 = sphi 0, %s156
      %s160 = sphi 0, %s159
      %s176 = sphi 0, %s160
      %s182 = sphi 0, %s184
      %s185 = sphi 0, %s182
      %s186 = sphi 0, %s185
      %s202 = sphi 0, %s186
      %s208 = sphi 0, %s210
      %s211 = sphi 0, %s208
      %s212 = sphi 0, %s211
      %s228 = sphi 0, %s212
    $region4: #{residual_block_forward.4} parent=1 // loop_header_branch
      %18 = sbr.rel (%p16) target = $region8
    $region5: #{residual_block_forward.4} parent=1 // loop_body
      %s20 = ssub.s32 %s15, 1
      %s21 = ssub.s32 %s15, 2
      %s22 = sadd.s32 %s15, 1
      %s23 = ssub.s32 %s15, %s22
      %p24 = scmp.eq.s32.totalorder %s23, 0
      %s26 = sadd.s32 %s25, 1
      %s27 = scalar_select %p24, %s25, %s26
      %p30 = pneg %p24
      %p31 = scmp.eq.s32.totalorder %s15, 1
      %p32 = por %p30, %p31
      %p33 = scmp.ne.s32.totalorder %s25, %s28
      %p34 = scmp.eq.s32.totalorder %s15, 0
      %p35 = por %p33, %p34
      %p36 = scmp.ne.s32.totalorder %s25, %s28
      %p37 = scmp.eq.s32.totalorder %s20, 1
      %p38 = por %p36, %p37
      %p39 = scmp.ne.s32.totalorder %s28, %s29
      %p40 = scmp.eq.s32.totalorder %s20, 0
      %p41 = por %p39, %p40
      %p42 = scmp.ne.s32.totalorder %s28, %s29
      %p43 = scmp.eq.s32.totalorder %s21, 1
      %p44 = por %p42, %p43
      %p46 = scmp.ne.s32.totalorder %s29, %s45
      %p47 = scmp.eq.s32.totalorder %s21, 0
      %p48 = por %p46, %p47
      %s50 = sadd.s32 %s49, 1
      %p53 = scmp.eq.s32.totalorder %s15, 1
      %p54 = scmp.ne.s32.totalorder %s49, %s51
      %p55 = scmp.eq.s32.totalorder %s15, 0
      %p56 = por %p54, %p55
      %p57 = scmp.ne.s32.totalorder %s49, %s51
      %p58 = scmp.eq.s32.totalorder %s20, 1
      %p59 = por %p57, %p58
      %p60 = scmp.ne.s32.totalorder %s51, %s52
      %p61 = scmp.eq.s32.totalorder %s20, 0
      %p62 = por %p60, %p61
      %p63 = scmp.ne.s32.totalorder %s51, %s52
      %p64 = scmp.eq.s32.totalorder %s21, 1
      %p65 = por %p63, %p64
      %p67 = scmp.ne.s32.totalorder %s52, %s66
      %p68 = scmp.eq.s32.totalorder %s21, 0
      %p69 = por %p67, %p68
      %s71 = sadd.s32 %s70, 1
      %p74 = scmp.eq.s32.totalorder %s15, 1
      %p75 = scmp.ne.s32.totalorder %s70, %s72
      %p76 = scmp.eq.s32.totalorder %s15, 0
      %p77 = por %p75, %p76
      %p78 = scmp.ne.s32.totalorder %s70, %s72
      %p79 = scmp.eq.s32.totalorder %s20, 1
      %p80 = por %p78, %p79
      %p81 = scmp.ne.s32.totalorder %s72, %s73
      %p82 = scmp.eq.s32.totalorder %s20, 0
      %p83 = por %p81, %p82
      %p84 = scmp.ne.s32.totalorder %s72, %s73
      %p85 = scmp.eq.s32.totalorder %s21, 1
      %p86 = por %p84, %p85
      %p88 = scmp.ne.s32.totalorder %s73, %s87
      %p89 = scmp.eq.s32.totalorder %s21, 0
      %p90 = por %p88, %p89
      %s92 = sadd.s32 %s91, 1
      %p95 = scmp.eq.s32.totalorder %s15, 1
      %p96 = scmp.ne.s32.totalorder %s91, %s93
      %p97 = scmp.eq.s32.totalorder %s15, 0
      %p98 = por %p96, %p97
      %p99 = scmp.ne.s32.totalorder %s91, %s93
      %p100 = scmp.eq.s32.totalorder %s20, 1
      %p101 = por %p99, %p100
      %p102 = scmp.ne.s32.totalorder %s93, %s94
      %p103 = scmp.eq.s32.totalorder %s20, 0
      %p104 = por %p102, %p103
      %p105 = scmp.ne.s32.totalorder %s93, %s94
      %p106 = scmp.eq.s32.totalorder %s21, 1
      %p107 = por %p105, %p106
      %p109 = scmp.ne.s32.totalorder %s94, %s108
      %p110 = scmp.eq.s32.totalorder %s21, 0
      %p111 = por %p109, %p110
      %s113 = sadd.s32 %s112, 1
      %p116 = scmp.eq.s32.totalorder %s15, 1
      %p117 = scmp.ne.s32.totalorder %s112, %s114
      %p118 = scmp.eq.s32.totalorder %s15, 0
      %p119 = por %p117, %p118
      %p120 = scmp.ne.s32.totalorder %s112, %s114
      %p121 = scmp.eq.s32.totalorder %s20, 1
      %p122 = por %p120, %p121
      %p123 = scmp.ne.s32.totalorder %s114, %s115
      %p124 = scmp.eq.s32.totalorder %s20, 0
      %p125 = por %p123, %p124
      %p126 = scmp.ne.s32.totalorder %s114, %s115
      %p127 = scmp.eq.s32.totalorder %s21, 1
      %p128 = por %p126, %p127
      %p130 = scmp.ne.s32.totalorder %s115, %s129
      %p131 = scmp.eq.s32.totalorder %s21, 0
      %p132 = por %p130, %p131
      %s134 = sadd.s32 %s133, 1
      %p137 = scmp.eq.s32.totalorder %s15, 1
      %p138 = scmp.ne.s32.totalorder %s133, %s135
      %p139 = scmp.eq.s32.totalorder %s15, 0
      %p140 = por %p138, %p139
      %p141 = scmp.ne.s32.totalorder %s133, %s135
      %p142 = scmp.eq.s32.totalorder %s20, 1
      %p143 = por %p141, %p142
      %p144 = scmp.ne.s32.totalorder %s135, %s136
      %p145 = scmp.eq.s32.totalorder %s20, 0
      %p146 = por %p144, %p145
      %p147 = scmp.ne.s32.totalorder %s135, %s136
      %p148 = scmp.eq.s32.totalorder %s21, 1
      %p149 = por %p147, %p148
      %p151 = scmp.ne.s32.totalorder %s136, %s150
      %p152 = scmp.eq.s32.totalorder %s21, 0
      %p153 = por %p151, %p152
      %s154 = ssub.s32 %s15, %s22
      %p155 = scmp.eq.s32.totalorder %s154, 0
      %s157 = sadd.s32 %s156, 1
      %s158 = scalar_select %p155, %s156, %s157
      %p161 = pneg %p155
      %p162 = scmp.eq.s32.totalorder %s15, 1
      %p163 = por %p161, %p162
      %p164 = scmp.ne.s32.totalorder %s156, %s159
      %p165 = scmp.eq.s32.totalorder %s15, 0
      %p166 = por %p164, %p165
      %p167 = scmp.ne.s32.totalorder %s156, %s159
      %p168 = scmp.eq.s32.totalorder %s20, 1
      %p169 = por %p167, %p168
      %p170 = scmp.ne.s32.totalorder %s159, %s160
      %p171 = scmp.eq.s32.totalorder %s20, 0
      %p172 = por %p170, %p171
      %p173 = scmp.ne.s32.totalorder %s159, %s160
      %p174 = scmp.eq.s32.totalorder %s21, 1
      %p175 = por %p173, %p174
      %p177 = scmp.ne.s32.totalorder %s160, %s176
      %p178 = scmp.eq.s32.totalorder %s21, 0
      %p179 = por %p177, %p178
      %s180 = ssub.s32 %s15, %s22
      %p181 = scmp.eq.s32.totalorder %s180, 0
      %s183 = sadd.s32 %s182, 1
      %s184 = scalar_select %p181, %s182, %s183
      %p187 = pneg %p181
      %p188 = scmp.eq.s32.totalorder %s15, 1
      %p189 = por %p187, %p188
      %p190 = scmp.ne.s32.totalorder %s182, %s185
      %p191 = scmp.eq.s32.totalorder %s15, 0
      %p192 = por %p190, %p191
      %p193 = scmp.ne.s32.totalorder %s182, %s185
      %p194 = scmp.eq.s32.totalorder %s20, 1
      %p195 = por %p193, %p194
      %p196 = scmp.ne.s32.totalorder %s185, %s186
      %p197 = scmp.eq.s32.totalorder %s20, 0
      %p198 = por %p196, %p197
      %p199 = scmp.ne.s32.totalorder %s185, %s186
      %p200 = scmp.eq.s32.totalorder %s21, 1
      %p201 = por %p199, %p200
      %p203 = scmp.ne.s32.totalorder %s186, %s202
      %p204 = scmp.eq.s32.totalorder %s21, 0
      %p205 = por %p203, %p204
      %s206 = ssub.s32 %s15, %s22
      %p207 = scmp.eq.s32.totalorder %s206, 0
      %s209 = sadd.s32 %s208, 1
      %s210 = scalar_select %p207, %s208, %s209
      %p213 = pneg %p207
      %p214 = scmp.eq.s32.totalorder %s15, 1
      %p215 = por %p213, %p214
      %p216 = scmp.ne.s32.totalorder %s208, %s211
      %p217 = scmp.eq.s32.totalorder %s15, 0
      %p218 = por %p216, %p217
      %p219 = scmp.ne.s32.totalorder %s208, %s211
      %p220 = scmp.eq.s32.totalorder %s20, 1
      %p221 = por %p219, %p220
      %p222 = scmp.ne.s32.totalorder %s211, %s212
      %p223 = scmp.eq.s32.totalorder %s20, 0
      %p224 = por %p222, %p223
      %p225 = scmp.ne.s32.totalorder %s211, %s212
      %p226 = scmp.eq.s32.totalorder %s21, 1
      %p227 = por %p225, %p226
      %p229 = scmp.ne.s32.totalorder %s212, %s228
      %p230 = scmp.eq.s32.totalorder %s21, 0
      %p231 = por %p229, %p230
      %p232 = scmp.le.s32.totalorder 1, %s15
      %p233 = scmp.lt.s32.totalorder %s15, 3
      %p234 = pnand %p232, %p233
      %p235 = pneg %p234
      // Predicated region
      $region9: #{residual_block_forward.4} parent=5 // pred_check
        _
      $region10: #{residual_block_forward.4} parent=5 // pred_check_branch
        %237 = sbr.rel (%p234) target = $region12
      $region11: #{residual_block_forward.4} parent=5 // pred_region
        %s238 = ssub.s32 %s15, 1
        // Predicated region
        $region13: #{residual_block_forward.4} parent=11 // pred_check
          %p239 = pneg %p62
        $region14: #{residual_block_forward.4} parent=11 // pred_check_branch
          %241 = sbr.rel (%p239) target = $region16
        $region15: #{residual_block_forward.4} parent=11 // pred_region
          _
        $region16: #{residual_block_forward.4} parent=11 // pred_fallthru
          _
        // Predicated region
        $region17: #{residual_block_forward.4} parent=11 // pred_check
          %p242 = pneg %p83
        $region18: #{residual_block_forward.4} parent=11 // pred_check_branch
          %244 = sbr.rel (%p242) target = $region20
        $region19: #{residual_block_forward.4} parent=11 // pred_region
          _
        $region20: #{residual_block_forward.4} parent=11 // pred_fallthru
          _
        // Predicated region
        $region21: #{residual_block_forward.4} parent=11 // pred_check
          %p245 = pneg %p104
        $region22: #{residual_block_forward.4} parent=11 // pred_check_branch
          %247 = sbr.rel (%p245) target = $region24
        $region23: #{residual_block_forward.4} parent=11 // pred_region
          _
        $region24: #{residual_block_forward.4} parent=11 // pred_fallthru
          _
        // Predicated region
        $region25: #{residual_block_forward.4} parent=11 // pred_check
          %p248 = pneg %p125
        $region26: #{residual_block_forward.4} parent=11 // pred_check_branch
          %250 = sbr.rel (%p248) target = $region28
        $region27: #{residual_block_forward.4} parent=11 // pred_region
          _
        $region28: #{residual_block_forward.4} parent=11 // pred_fallthru
          _
        // Predicated region
        $region29: #{residual_block_forward.4} parent=11 // pred_check
          %p251 = pneg %p146
        $region30: #{residual_block_forward.4} parent=11 // pred_check_branch
          %253 = sbr.rel (%p251) target = $region32
        $region31: #{residual_block_forward.4} parent=11 // pred_region
          _
        $region32: #{residual_block_forward.4} parent=11 // pred_fallthru
          _
      $region12: #{residual_block_forward.4} parent=5 // pred_fallthru
        _
      %p254 = scmp.lt.s32.totalorder %s15, 2
      // Predicated region
      $region33: #{residual_block_forward.4} parent=5 // pred_check
        %p255 = pneg %p254
      $region34: #{residual_block_forward.4} parent=5 // pred_check_branch
        %257 = sbr.rel (%p255) target = $region36
      $region35: #{residual_block_forward.4} parent=5 // pred_region
        // Predicated region
        $region37: #{residual_block_forward.4} parent=35 // pred_check
          %p258 = pneg %p35
        $region38: #{residual_block_forward.4} parent=35 // pred_check_branch
          %260 = sbr.rel (%p258) target = $region40
        $region39: #{residual_block_forward.4} parent=35 // pred_region
          %s261 = smul.u32 2, %s15
          %p262 = scmp.lt.s32.totalorder %s261, 3
          %s263 = scalar_select %p262, %s261, 3
          %s264 = smul.addr %s263, 2
          %s265 = scalar_lea.vmem %s0, %s264
          %s266 = smul.u32 2, %s15
        $region40: #{residual_block_forward.4} parent=35 // pred_fallthru
          _
      $region36: #{residual_block_forward.4} parent=5 // pred_fallthru
        _
      %p267 = scmp.le.s32.totalorder 1, %s15
      %p268 = scmp.lt.s32.totalorder %s15, 3
      %p269 = pnand %p267, %p268
      %p270 = pneg %p269
      // Predicated region
      $region41: #{residual_block_forward.4} parent=5 // pred_check
        _
      $region42: #{residual_block_forward.4} parent=5 // pred_check_branch
        %272 = sbr.rel (%p269) target = $region44
      $region43: #{residual_block_forward.4} parent=5 // pred_region
        %s273 = ssub.s32 %s15, 1
        %s274 = smul.u32 2, %s20
        %p275 = scmp.lt.s32.totalorder %s274, 3
        %s276 = scalar_select %p275, %s274, 3
        %s277 = smul.addr %s276, 2
        %s278 = scalar_lea.vmem %s0, %s277
        %p279 = pneg %p41
        %p280 = pneg %p38
        %p281 = pneg %p62
        %p282 = pneg %p59
        %p283 = pneg %p83
        %p284 = pneg %p80
        %p285 = pneg %p104
        %p286 = pneg %p101
        %p287 = pneg %p125
        %p288 = pneg %p122
        %p289 = pneg %p146
        %p290 = pneg %p143
        %p291 = pneg %p172
        %p292 = pneg %p169
        %s293 = sand.u32 %s159, 1
        %s294 = sand.u32 %s159, 1
        %s295 = smul.addr %s294, 32
        %s296 = scalar_lea.vmem [#allocation2], %s295
        %p297 = pneg %p198
        %p298 = pneg %p195
        %s299 = smul.u32 2, %s20
        %p300 = scmp.lt.s32.totalorder %s299, 3
        %s301 = scalar_select %p300, %s299, 3
        %s302 = smul.addr %s301, 4
        %s303 = scalar_lea.vmem %s7, %s302
        %p304 = pneg %p224
        %p305 = pneg %p221
        %p306 = scmp.lt.s32.totalorder %s20, 1
        %s307 = scalar_select %p306, %s20, 1
        %s308 = smul.addr %s307, 4
        %s309 = scalar_lea.vmem %s8, %s308
        %s310 = smul.u32 2, %s20
        %p311 = scmp.lt.s32.totalorder %s310, 3
        %s312 = scalar_select %p311, %s310, 3
        %s313 = smul.addr %s312, 2
        %s314 = scalar_lea.vmem %s0, %s313
        %s315 = smul.u32 2, %s20
        %s316 = smul.u32 2, %s20
        %s317 = smul.u32 2, %s20
        %p318 = scmp.lt.s32.totalorder %s317, 3
        %s319 = scalar_select %p318, %s317, 3
        %s320 = smul.addr %s319, 4
        %s321 = scalar_lea.vmem %s7, %s320
        %s322 = smul.u32 2, %s20
        %p323 = scmp.lt.s32.totalorder %s20, 1
        %s324 = scalar_select %p323, %s20, 1
        %s325 = smul.addr %s324, 4
        %s326 = scalar_lea.vmem %s8, %s325
        %v328 = vld [vmem:[%s314] sm:$0xf]
        %v329 = vld [vmem:[%s2] sm:$0x3]
        %v330 = vld [vmem:[%s3] sm:$0xf]
        %332 = vset.pattern.permute.xlu0 0
        %333 = vperm.xlu0 %332, %v330
        %v334 = vpop.permute.xlu0 %333
        %337 = vst [vmem:[#allocation1] ss:$4 sm:$0xff] %v328
        %v338 = vld.sshfl [vmem:[#allocation1] sm:$0xff pattern:$0x73625140]
        %v339 = vld.sshfl [vmem:[#allocation1 + $0x8] sm:$0xff pattern:$0x73625140]
        %vm340 = vcmask 31744
        %v342 = vsel %vm340, %v329, 0
        %vm344 = vcmask 1041408
        %v345 = vsel %vm344, %v338, 0
        %v347 = vsel %vm344, %v339, 0
        %349 = vmatpush.bf16.msra.mxu0 0
        %350 = vmatpush.bf16.msra.mxu0 0
        %351 = vmatpush.bf16.msra.mxu0 0
        %352 = vmatpush.bf16.msra.mxu0 0
        %353 = vmatpush.bf16.msra.mxu0 0
        %354 = vmatpush.bf16.msra.mxu0 0
        %355 = vmatpush.bf16.msra.mxu0 0
        %356 = vmatpush.bf16.msra.mxu0 %v345
        %357 = vmatmul.bf16.gmra.mxu0 %v342
        %v358 = vpop.f32.mrf.mxu0
        %v359 = vadd.f32 %v334, %v358
        %v360 = vpop.f32.mrf.mxu0
        %361 = vdwg.mxu0
        %362 = vmatpush.bf16.msra.mxu0 0
        %363 = vmatpush.bf16.msra.mxu0 0
        %364 = vmatpush.bf16.msra.mxu0 0
        %365 = vmatpush.bf16.msra.mxu0 0
        %366 = vmatpush.bf16.msra.mxu0 0
        %367 = vmatpush.bf16.msra.mxu0 0
        %368 = vmatpush.bf16.msra.mxu0 0
        %369 = vmatpush.bf16.msra.mxu0 %v347
        %370 = vmatmul.bf16.gmra.mxu0 %v342
        %v371 = vpop.f32.mrf.mxu0
        %v372 = vadd.f32 %v334, %v371
        %v373 = vpop.f32.mrf.mxu0
        %374 = vdwg.mxu0
        %v377 = vrot.slane %v372, 4
        %vm378 = vcmask 1043456
        %v379 = vsel %vm378, %v359, %v377
        %381 = vst [vmem:[%s321] sm:$0xff] %v379
        %v382 = vld [vmem:[%s1] sm:$0x3]
        %v384 = vperm.slane %v382, 0
        %v385 = vperm.slane %v382, 1
        %v388 = vmul.f32 %v359, %v384
        %v389 = vmul.f32 %v372, %v385
        %v390 = vsel %vm378, %v388, 0.0
        %v391 = vsel %vm378, %v389, 0.0
        %v392 = vadd.f32 %v390, %v391
        %393 = vadd.xlane.f32.xlu0 %v392
        %v394 = vpop.xlane.xlu0 %393
        %vm395 = vcmask 3072
        %396 = vst.msk [vmem:[%s326] sm:$0xf] %vm395, %v394
        %v397 = vmul.f32 %v388, %v359
        %v398 = vmul.f32 %v389, %v372
        %v399 = vsel %vm378, %v397, 0.0
        %v400 = vsel %vm378, %v398, 0.0
        %v401 = vadd.f32 %v399, %v400
        %402 = vadd.xlane.f32.xlu0 %v401
        %v403 = vpop.xlane.xlu0 %402
        %vm404 = vcmask 11272
        %405 = vst.msk [vmem:[%s326] sm:$0xf] %vm404, %v403
        %v406 = vld [vmem:[%s4] sm:$0xf]
        %v407 = vld [vmem:[%s4 + $0x4] sm:$0xf]
        %v408 = vld [vmem:[%s5] sm:$0xff]
        %v409 = vld [vmem:[%s5 + $0x8] sm:$0xff]
        %411 = vset.pattern.permute.xlu0 0
        %412 = vperm.xlu0 %411, %v408
        %v413 = vpop.permute.xlu0 %412
        %416 = vset.pattern.permute.xlu0 0
        %417 = vperm.xlu0 %416, %v409
        %v418 = vpop.permute.xlu0 %417
        %v422 = vunpack.c.l.b16 %v406
        %v423 = vunpack.c.l.b16 %v407
        %v424 = vpack.c.b16 %v423, %v422
        %425 = vst [vmem:[#allocation1] ss:$4 sm:$0xff] %v328
        %v426 = vld.sshfl [vmem:[#allocation1] sm:$0xff pattern:$0x73625140]
        %v427 = vld.sshfl [vmem:[#allocation1 + $0x8] sm:$0xff pattern:$0x73625140]
        %v429 = vsel %vm340, %v424, 0
        %v431 = vsel %vm344, %v426, 0
        %v433 = vsel %vm344, %v427, 0
        %435 = vmatpush.bf16.msra.mxu0 0
        %436 = vmatpush.bf16.msra.mxu0 0
        %437 = vmatpush.bf16.msra.mxu0 0
        %438 = vmatpush.bf16.msra.mxu0 0
        %439 = vmatpush.bf16.msra.mxu0 0
        %440 = vmatpush.bf16.msra.mxu0 0
        %441 = vmatpush.bf16.msra.mxu0 0
        %442 = vmatpush.bf16.msra.mxu0 %v431
        %443 = vmatmul.bf16.gmra.mxu0 %v429
        %v444 = vpop.f32.mrf.mxu0
        %v445 = vadd.f32 %v413, %v444
        %v446 = vpop.f32.mrf.mxu0
        %v447 = vadd.f32 %v418, %v446
        %448 = vdwg.mxu0
        %449 = vmatpush.bf16.msra.mxu0 0
        %450 = vmatpush.bf16.msra.mxu0 0
        %451 = vmatpush.bf16.msra.mxu0 0
        %452 = vmatpush.bf16.msra.mxu0 0
        %453 = vmatpush.bf16.msra.mxu0 0
        %454 = vmatpush.bf16.msra.mxu0 0
        %455 = vmatpush.bf16.msra.mxu0 0
        %456 = vmatpush.bf16.msra.mxu0 %v433
        %457 = vmatmul.bf16.gmra.mxu0 %v429
        %v458 = vpop.f32.mrf.mxu0
        %v459 = vadd.f32 %v413, %v458
        %v460 = vpop.f32.mrf.mxu0
        %v461 = vadd.f32 %v418, %v460
        %462 = vdwg.mxu0
        %463 = vst [vmem:[%s296] sm:$0xff] %v445
        %464 = vst [vmem:[%s296 + $0x8] sm:$0xff] %v459
        %465 = vst [vmem:[%s296 + $0x10] sm:$0xff] %v447
        %466 = vst [vmem:[%s296 + $0x18] sm:$0xff] %v461
        %s467 = sand.u32 %s159, 1
        %s468 = sand.u32 %s159, 1
        %s469 = smul.addr %s468, 32
        %s470 = scalar_lea.vmem [#allocation2], %s469
        %s471 = smul.u32 2, %s20
        %p472 = scmp.lt.s32.totalorder %s471, 3
        %s473 = scalar_select %p472, %s471, 3
        %s474 = smul.addr %s473, 4
        %s475 = scalar_lea.vmem %s7, %s474
        %p476 = scmp.lt.s32.totalorder %s20, 1
        %s477 = scalar_select %p476, %s20, 1
        %s478 = smul.addr %s477, 4
        %s479 = scalar_lea.vmem %s8, %s478
        // Predicated region
        $region45: #{residual_block_forward.4} parent=43 // pred_check
          %p480 = pneg %p169
        $region46: #{residual_block_forward.4} parent=43 // pred_check_branch
          %482 = sbr.rel (%p480) target = $region48
        $region47: #{residual_block_forward.4} parent=43 // pred_region
          %s483 = smul.u32 2, %s20
          %s484 = smul.addr %s483, 8
          %s485 = scalar_lea.vmem %s6, %s484
          // Predicated region
          $region49: #{residual_block_forward.4} parent=47 // pred_check
            _
          $region50: #{residual_block_forward.4} parent=47 // pred_check_branch
            %487 = sbr.rel (0) target = $region52
          $region51: #{residual_block_forward.4} parent=47 // pred_region
            // Predicated region
            $region53: #{residual_block_forward.4} parent=51 // pred_check
              _
            $region54: #{residual_block_forward.4} parent=51 // pred_check_branch
              %489 = sbr.rel (0) target = $region56
            $region55: #{residual_block_forward.4} parent=51 // pred_region
              loop: start=0, step=1, limit=1
              $region57: #{residual_block_forward.4} parent=55 // loop_pre_header
                _
              $region58: #{residual_block_forward.4} parent=55 // loop_header
                %s491 = sphi 0, %s495
                %p492 = scmp.ge.s32.totalorder %s491, 1
                %s496 = sphi %s470, %s470
                %s497 = sphi %s485, %s485
              $region59: #{residual_block_forward.4} parent=55 // loop_header_branch
                %494 = sbr.rel (%p492) target = $region63
              $region60: #{residual_block_forward.4} parent=55 // loop_body
                %v498 = vld [vmem:[%s496] sm:$0xff]
                %499 = vst [vmem:[%s497] sm:$0xff] %v498
                %v500 = vld [vmem:[%s496 + $0x8] sm:$0xff]
                %501 = vst [vmem:[%s497 + $0x8] sm:$0xff] %v500
                %v502 = vld [vmem:[%s496 + $0x10] sm:$0xff]
                %503 = vst [vmem:[%s497 + $0x20] sm:$0xff] %v502
                %v504 = vld [vmem:[%s496 + $0x18] sm:$0xff]
                %505 = vst [vmem:[%s497 + $0x28] sm:$0xff] %v504
              $region61: #{residual_block_forward.4} parent=55 // loop_footer
                %s495 = sadd.s32 1, %s491
              $region62: #{residual_block_forward.4} parent=55 // loop_footer_branch
                %490 = sbr.rel target = $region58
              $region63: #{residual_block_forward.4} parent=55 // loop_exit
                _
            $region56: #{residual_block_forward.4} parent=51 // pred_fallthru
              _
            // Predicated region
            $region64: #{residual_block_forward.4} parent=51 // pred_check
              _
            $region65: #{residual_block_forward.4} parent=51 // pred_check_branch
              %507 = sbr.rel target = $region67
            $region66: #{residual_block_forward.4} parent=51 // pred_region
              _
            $region67: #{residual_block_forward.4} parent=51 // pred_fallthru
              _
          $region52: #{residual_block_forward.4} parent=47 // pred_fallthru
            _
          %508 = vnop
        $region48: #{residual_block_forward.4} parent=43 // pred_fallthru
          _
        // Predicated region
        $region68: #{residual_block_forward.4} parent=43 // pred_check
          %p509 = pneg %p195
        $region69: #{residual_block_forward.4} parent=43 // pred_check_branch
          %511 = sbr.rel (%p509) target = $region71
        $region70: #{residual_block_forward.4} parent=43 // pred_region
          %s512 = smul.u32 2, %s20
        $region71: #{residual_block_forward.4} parent=43 // pred_fallthru
          _
        // Predicated region
        $region72: #{residual_block_forward.4} parent=43 // pred_check
          %p513 = pneg %p221
        $region73: #{residual_block_forward.4} parent=43 // pred_check_branch
          %515 = sbr.rel (%p513) target = $region75
        $region74: #{residual_block_forward.4} parent=43 // pred_region
          _
        $region75: #{residual_block_forward.4} parent=43 // pred_fallthru
          _
      $region44: #{residual_block_forward.4} parent=5 // pred_fallthru
        _
      %p516 = scmp.le.s32.totalorder 2, %s15
      // Predicated region
      $region76: #{residual_block_forward.4} parent=5 // pred_check
        %p517 = pneg %p516
      $region77: #{residual_block_forward.4} parent=5 // pred_check_branch
        %519 = sbr.rel (%p517) target = $region79
      $region78: #{residual_block_forward.4} parent=5 // pred_region
        %s520 = ssub.s32 %s15, 2
        // Predicated region
        $region80: #{residual_block_forward.4} parent=78 // pred_check
          %p521 = pneg %p175
        $region81: #{residual_block_forward.4} parent=78 // pred_check_branch
          %523 = sbr.rel (%p521) target = $region83
        $region82: #{residual_block_forward.4} parent=78 // pred_region
          %s524 = sand.u32 %s160, 1
          %s525 = sand.u32 %s160, 1
          %s526 = smul.addr %s525, 32
          %s527 = scalar_lea.vmem [#allocation2], %s526
        $region83: #{residual_block_forward.4} parent=78 // pred_fallthru
          _
        // Predicated region
        $region84: #{residual_block_forward.4} parent=78 // pred_check
          %p528 = pneg %p201
        $region85: #{residual_block_forward.4} parent=78 // pred_check_branch
          %530 = sbr.rel (%p528) target = $region87
        $region86: #{residual_block_forward.4} parent=78 // pred_region
          %s531 = smul.u32 2, %s21
          %p532 = scmp.lt.s32.totalorder %s531, 3
          %s533 = scalar_select %p532, %s531, 3
          %s534 = smul.addr %s533, 4
          %s535 = scalar_lea.vmem %s7, %s534
        $region87: #{residual_block_forward.4} parent=78 // pred_fallthru
          _
        // Predicated region
        $region88: #{residual_block_forward.4} parent=78 // pred_check
          %p536 = pneg %p227
        $region89: #{residual_block_forward.4} parent=78 // pred_check_branch
          %538 = sbr.rel (%p536) target = $region91
        $region90: #{residual_block_forward.4} parent=78 // pred_region
          %p539 = scmp.lt.s32.totalorder %s21, 1
          %s540 = scalar_select %p539, %s21, 1
          %s541 = smul.addr %s540, 4
          %s542 = scalar_lea.vmem %s8, %s541
        $region91: #{residual_block_forward.4} parent=78 // pred_fallthru
          _
      $region79: #{residual_block_forward.4} parent=5 // pred_fallthru
        _
    $region6: #{residual_block_forward.4} parent=1 // loop_footer
      %s19 = sadd.s32 1, %s15
    $region7: #{residual_block_forward.4} parent=1 // loop_footer_branch
      %14 = sbr.rel target = $region3
    $region8: #{residual_block_forward.4} parent=1 // loop_exit
      _

// kernel: residual_block_forward.7
$region0: #{residual_block_forward.7}
  #allocation0 [shape = 'u32[]', space=smem, size = 0x4, offset = 0x4, fixed_abs, tag = 'smem constant byte address 0x4 - core index']
  #allocation1 [shape = 'u32[72,128]{1,0:T(1,128)}', space=vmem, size = 0x9000, scoped, tag = 'internal scratch']
  %s0 = inlined_call_operand.vmem [shape: f32[16,512], index: 0, kind: input, shape index: {}]
  %s1 = inlined_call_operand.vmem [shape: f32[16,512], index: 1, kind: input, shape index: {}]
  %s2 = inlined_call_operand.vmem [shape: f32[16,1], index: 2, kind: input, shape index: {}]
  %s3 = inlined_call_operand.vmem [shape: f32[16,1], index: 3, kind: input, shape index: {}]
  %s4 = inlined_call_operand.vmem [shape: f32[16,512], index: 4, kind: output, shape index: {}]
  %s5 = sld [smem:[#allocation0]]
  $region114: #{residual_block_forward.7} parent=0
    _
  %s7 = ssub.s32 1, %s5
  %s8 = scalar_select 0, %s7, %s5
  $region1: #{residual_block_forward.7} parent=0
    #allocation2 [shape = 'u8[32768]{0}', space=vmem, size = 0x8000, scoped, tag = 'input window, operand 0']
    #allocation3 [shape = 'u8[32768]{0}', space=vmem, size = 0x8000, scoped, tag = 'input window, operand 1']
    #allocation4 [shape = 'u8[32768]{0}', space=vmem, size = 0x8000, scoped, tag = 'output window, operand 0']
    loop: start=0, step=1, limit=4
    $region2: #{residual_block_forward.7} parent=1 // loop_pre_header
      _
    $region3: #{residual_block_forward.7} parent=1 // loop_header
      %s10 = sphi 0, %s14
      %p11 = scmp.ge.s32.totalorder %s10, 4
      %s20 = sphi 0, %s22
      %s23 = sphi 0, %s20
      %s24 = sphi 0, %s23
      %s40 = sphi 0, %s24
      %s46 = sphi 0, %s48
      %s49 = sphi 0, %s46
      %s50 = sphi 0, %s49
      %s66 = sphi 0, %s50
      %s70 = sphi 0, %s70
      %s72 = sphi 0, %s70
      %s73 = sphi 0, %s72
      %s87 = sphi 0, %s73
      %s91 = sphi 0, %s91
      %s93 = sphi 0, %s91
      %s94 = sphi 0, %s93
      %s108 = sphi 0, %s94
      %s114 = sphi 0, %s116
      %s117 = sphi 0, %s114
      %s118 = sphi 0, %s117
      %s134 = sphi 0, %s118
    $region4: #{residual_block_forward.7} parent=1 // loop_header_branch
      %13 = sbr.rel (%p11) target = $region8
    $region5: #{residual_block_forward.7} parent=1 // loop_body
      %s15 = ssub.s32 %s10, 1
      %s16 = ssub.s32 %s10, 2
      %s17 = sadd.s32 %s10, 1
      %s18 = ssub.s32 %s10, %s17
      %p19 = scmp.eq.s32.totalorder %s18, 0
      %s21 = sadd.s32 %s20, 1
      %s22 = scalar_select %p19, %s20, %s21
      %p25 = pneg %p19
      %p26 = scmp.eq.s32.totalorder %s10, 1
      %p27 = por %p25, %p26
      %p28 = scmp.ne.s32.totalorder %s20, %s23
      %p29 = scmp.eq.s32.totalorder %s10, 0
      %p30 = por %p28, %p29
      %p31 = scmp.ne.s32.totalorder %s20, %s23
      %p32 = scmp.eq.s32.totalorder %s15, 1
      %p33 = por %p31, %p32
      %p34 = scmp.ne.s32.totalorder %s23, %s24
      %p35 = scmp.eq.s32.totalorder %s15, 0
      %p36 = por %p34, %p35
      %p37 = scmp.ne.s32.totalorder %s23, %s24
      %p38 = scmp.eq.s32.totalorder %s16, 1
      %p39 = por %p37, %p38
      %p41 = scmp.ne.s32.totalorder %s24, %s40
      %p42 = scmp.eq.s32.totalorder %s16, 0
      %p43 = por %p41, %p42
      %s44 = ssub.s32 %s10, %s17
      %p45 = scmp.eq.s32.totalorder %s44, 0
      %s47 = sadd.s32 %s46, 1
      %s48 = scalar_select %p45, %s46, %s47
      %p51 = pneg %p45
      %p52 = scmp.eq.s32.totalorder %s10, 1
      %p53 = por %p51, %p52
      %p54 = scmp.ne.s32.totalorder %s46, %s49
      %p55 = scmp.eq.s32.totalorder %s10, 0
      %p56 = por %p54, %p55
      %p57 = scmp.ne.s32.totalorder %s46, %s49
      %p58 = scmp.eq.s32.totalorder %s15, 1
      %p59 = por %p57, %p58
      %p60 = scmp.ne.s32.totalorder %s49, %s50
      %p61 = scmp.eq.s32.totalorder %s15, 0
      %p62 = por %p60, %p61
      %p63 = scmp.ne.s32.totalorder %s49, %s50
      %p64 = scmp.eq.s32.totalorder %s16, 1
      %p65 = por %p63, %p64
      %p67 = scmp.ne.s32.totalorder %s50, %s66
      %p68 = scmp.eq.s32.totalorder %s16, 0
      %p69 = por %p67, %p68
      %s71 = sadd.s32 %s70, 1
      %p74 = scmp.eq.s32.totalorder %s10, 1
      %p75 = scmp.ne.s32.totalorder %s70, %s72
      %p76 = scmp.eq.s32.totalorder %s10, 0
      %p77 = por %p75, %p76
      %p78 = scmp.ne.s32.totalorder %s70, %s72
      %p79 = scmp.eq.s32.totalorder %s15, 1
      %p80 = por %p78, %p79
      %p81 = scmp.ne.s32.totalorder %s72, %s73
      %p82 = scmp.eq.s32.totalorder %s15, 0
      %p83 = por %p81, %p82
      %p84 = scmp.ne.s32.totalorder %s72, %s73
      %p85 = scmp.eq.s32.totalorder %s16, 1
      %p86 = por %p84, %p85
      %p88 = scmp.ne.s32.totalorder %s73, %s87
      %p89 = scmp.eq.s32.totalorder %s16, 0
      %p90 = por %p88, %p89
      %s92 = sadd.s32 %s91, 1
      %p95 = scmp.eq.s32.totalorder %s10, 1
      %p96 = scmp.ne.s32.totalorder %s91, %s93
      %p97 = scmp.eq.s32.totalorder %s10, 0
      %p98 = por %p96, %p97
      %p99 = scmp.ne.s32.totalorder %s91, %s93
      %p100 = scmp.eq.s32.totalorder %s15, 1
      %p101 = por %p99, %p100
      %p102 = scmp.ne.s32.totalorder %s93, %s94
      %p103 = scmp.eq.s32.totalorder %s15, 0
      %p104 = por %p102, %p103
      %p105 = scmp.ne.s32.totalorder %s93, %s94
      %p106 = scmp.eq.s32.totalorder %s16, 1
      %p107 = por %p105, %p106
      %p109 = scmp.ne.s32.totalorder %s94, %s108
      %p110 = scmp.eq.s32.totalorder %s16, 0
      %p111 = por %p109, %p110
      %s112 = ssub.s32 %s10, %s17
      %p113 = scmp.eq.s32.totalorder %s112, 0
      %s115 = sadd.s32 %s114, 1
      %s116 = scalar_select %p113, %s114, %s115
      %p119 = pneg %p113
      %p120 = scmp.eq.s32.totalorder %s10, 1
      %p121 = por %p119, %p120
      %p122 = scmp.ne.s32.totalorder %s114, %s117
      %p123 = scmp.eq.s32.totalorder %s10, 0
      %p124 = por %p122, %p123
      %p125 = scmp.ne.s32.totalorder %s114, %s117
      %p126 = scmp.eq.s32.totalorder %s15, 1
      %p127 = por %p125, %p126
      %p128 = scmp.ne.s32.totalorder %s117, %s118
      %p129 = scmp.eq.s32.totalorder %s15, 0
      %p130 = por %p128, %p129
      %p131 = scmp.ne.s32.totalorder %s117, %s118
      %p132 = scmp.eq.s32.totalorder %s16, 1
      %p133 = por %p131, %p132
      %p135 = scmp.ne.s32.totalorder %s118, %s134
      %p136 = scmp.eq.s32.totalorder %s16, 0
      %p137 = por %p135, %p136
      %p138 = scmp.le.s32.totalorder 1, %s10
      %p139 = scmp.lt.s32.totalorder %s10, 3
      %p140 = pnand %p138, %p139
      %p141 = pneg %p140
      // Predicated region
      $region9: #{residual_block_forward.7} parent=5 // pred_check
        _
      $region10: #{residual_block_forward.7} parent=5 // pred_check_branch
        %143 = sbr.rel (%p140) target = $region12
      $region11: #{residual_block_forward.7} parent=5 // pred_region
        %s144 = ssub.s32 %s10, 1
        // Predicated region
        $region13: #{residual_block_forward.7} parent=11 // pred_check
          %p145 = pneg %p83
        $region14: #{residual_block_forward.7} parent=11 // pred_check_branch
          %147 = sbr.rel (%p145) target = $region16
        $region15: #{residual_block_forward.7} parent=11 // pred_region
          _
        $region16: #{residual_block_forward.7} parent=11 // pred_fallthru
          _
        // Predicated region
        $region17: #{residual_block_forward.7} parent=11 // pred_check
          %p148 = pneg %p104
        $region18: #{residual_block_forward.7} parent=11 // pred_check_branch
          %150 = sbr.rel (%p148) target = $region20
        $region19: #{residual_block_forward.7} parent=11 // pred_region
          _
        $region20: #{residual_block_forward.7} parent=11 // pred_fallthru
          _
      $region12: #{residual_block_forward.7} parent=5 // pred_fallthru
        _
      %p151 = scmp.lt.s32.totalorder %s10, 2
      // Predicated region
      $region21: #{residual_block_forward.7} parent=5 // pred_check
        %p152 = pneg %p151
      $region22: #{residual_block_forward.7} parent=5 // pred_check_branch
        %154 = sbr.rel (%p152) target = $region24
      $region23: #{residual_block_forward.7} parent=5 // pred_region
        // Predicated region
        $region25: #{residual_block_forward.7} parent=23 // pred_check
          %p155 = pneg %p30
        $region26: #{residual_block_forward.7} parent=23 // pred_check_branch
          %157 = sbr.rel (%p155) target = $region28
        $region27: #{residual_block_forward.7} parent=23 // pred_region
          %s158 = sand.u32 %s20, 1
          %s159 = sand.u32 %s20, 1
          %s160 = smul.addr %s159, 32
          %s161 = scalar_lea.vmem [#allocation2], %s160
          %s162 = smul.u32 2, %s10
          %s163 = smul.addr %s162, 8
          %s164 = scalar_lea.vmem %s0, %s163
          // Predicated region
          $region29: #{residual_block_forward.7} parent=27 // pred_check
            _
          $region30: #{residual_block_forward.7} parent=27 // pred_check_branch
            %166 = sbr.rel (0) target = $region32
          $region31: #{residual_block_forward.7} parent=27 // pred_region
            // Predicated region
            $region33: #{residual_block_forward.7} parent=31 // pred_check
              _
            $region34: #{residual_block_forward.7} parent=31 // pred_check_branch
              %168 = sbr.rel (0) target = $region36
            $region35: #{residual_block_forward.7} parent=31 // pred_region
              loop: start=0, step=1, limit=1
              $region37: #{residual_block_forward.7} parent=35 // loop_pre_header
                _
              $region38: #{residual_block_forward.7} parent=35 // loop_header
                %s170 = sphi 0, %s174
                %p171 = scmp.ge.s32.totalorder %s170, 1
                %s175 = sphi %s164, %s164
                %s176 = sphi %s161, %s161
              $region39: #{residual_block_forward.7} parent=35 // loop_header_branch
                %173 = sbr.rel (%p171) target = $region43
              $region40: #{residual_block_forward.7} parent=35 // loop_body
                %v177 = vld [vmem:[%s175] sm:$0xff]
                %178 = vst [vmem:[%s176] sm:$0xff] %v177
                %v179 = vld [vmem:[%s175 + $0x8] sm:$0xff]
                %180 = vst [vmem:[%s176 + $0x8] sm:$0xff] %v179
                %v181 = vld [vmem:[%s175 + $0x20] sm:$0xff]
                %182 = vst [vmem:[%s176 + $0x10] sm:$0xff] %v181
                %v183 = vld [vmem:[%s175 + $0x28] sm:$0xff]
                %184 = vst [vmem:[%s176 + $0x18] sm:$0xff] %v183
              $region41: #{residual_block_forward.7} parent=35 // loop_footer
                %s174 = sadd.s32 1, %s170
              $region42: #{residual_block_forward.7} parent=35 // loop_footer_branch
                %169 = sbr.rel target = $region38
              $region43: #{residual_block_forward.7} parent=35 // loop_exit
                _
            $region36: #{residual_block_forward.7} parent=31 // pred_fallthru
              _
            // Predicated region
            $region44: #{residual_block_forward.7} parent=31 // pred_check
              _
            $region45: #{residual_block_forward.7} parent=31 // pred_check_branch
              %186 = sbr.rel target = $region47
            $region46: #{residual_block_forward.7} parent=31 // pred_region
              _
            $region47: #{residual_block_forward.7} parent=31 // pred_fallthru
              _
          $region32: #{residual_block_forward.7} parent=27 // pred_fallthru
            _
          %187 = vnop
        $region28: #{residual_block_forward.7} parent=23 // pred_fallthru
          _
        // Predicated region
        $region48: #{residual_block_forward.7} parent=23 // pred_check
          %p188 = pneg %p56
        $region49: #{residual_block_forward.7} parent=23 // pred_check_branch
          %190 = sbr.rel (%p188) target = $region51
        $region50: #{residual_block_forward.7} parent=23 // pred_region
          %s191 = sand.u32 %s46, 1
          %s192 = sand.u32 %s46, 1
          %s193 = smul.addr %s192, 32
          %s194 = scalar_lea.vmem [#allocation3], %s193
          %s195 = smul.u32 2, %s10
          %s196 = smul.addr %s195, 8
          %s197 = scalar_lea.vmem %s1, %s196
          // Predicated region
          $region52: #{residual_block_forward.7} parent=50 // pred_check
            _
          $region53: #{residual_block_forward.7} parent=50 // pred_check_branch
            %199 = sbr.rel (0) target = $region55
          $region54: #{residual_block_forward.7} parent=50 // pred_region
            // Predicated region
            $region56: #{residual_block_forward.7} parent=54 // pred_check
              _
            $region57: #{residual_block_forward.7} parent=54 // pred_check_branch
              %201 = sbr.rel (0) target = $region59
            $region58: #{residual_block_forward.7} parent=54 // pred_region
              loop: start=0, step=1, limit=1
              $region60: #{residual_block_forward.7} parent=58 // loop_pre_header
                _
              $region61: #{residual_block_forward.7} parent=58 // loop_header
                %s203 = sphi 0, %s207
                %p204 = scmp.ge.s32.totalorder %s203, 1
                %s208 = sphi %s197, %s197
                %s209 = sphi %s194, %s194
              $region62: #{residual_block_forward.7} parent=58 // loop_header_branch
                %206 = sbr.rel (%p204) target = $region66
              $region63: #{residual_block_forward.7} parent=58 // loop_body
                %v210 = vld [vmem:[%s208] sm:$0xff]
                %211 = vst [vmem:[%s209] sm:$0xff] %v210
                %v212 = vld [vmem:[%s208 + $0x8] sm:$0xff]
                %213 = vst [vmem:[%s209 + $0x8] sm:$0xff] %v212
                %v214 = vld [vmem:[%s208 + $0x20] sm:$0xff]
                %215 = vst [vmem:[%s209 + $0x10] sm:$0xff] %v214
                %v216 = vld [vmem:[%s208 + $0x28] sm:$0xff]
                %217 = vst [vmem:[%s209 + $0x18] sm:$0xff] %v216
              $region64: #{residual_block_forward.7} parent=58 // loop_footer
                %s207 = sadd.s32 1, %s203
              $region65: #{residual_block_forward.7} parent=58 // loop_footer_branch
                %202 = sbr.rel target = $region61
              $region66: #{residual_block_forward.7} parent=58 // loop_exit
                _
            $region59: #{residual_block_forward.7} parent=54 // pred_fallthru
              _
            // Predicated region
            $region67: #{residual_block_forward.7} parent=54 // pred_check
              _
            $region68: #{residual_block_forward.7} parent=54 // pred_check_branch
              %219 = sbr.rel target = $region70
            $region69: #{residual_block_forward.7} parent=54 // pred_region
              _
            $region70: #{residual_block_forward.7} parent=54 // pred_fallthru
              _
          $region55: #{residual_block_forward.7} parent=50 // pred_fallthru
            _
          %220 = vnop
        $region51: #{residual_block_forward.7} parent=23 // pred_fallthru
          _
      $region24: #{residual_block_forward.7} parent=5 // pred_fallthru
        _
      %p221 = scmp.le.s32.totalorder 1, %s10
      %p222 = scmp.lt.s32.totalorder %s10, 3
      %p223 = pnand %p221, %p222
      %p224 = pneg %p223
      // Predicated region
      $region71: #{residual_block_forward.7} parent=5 // pred_check
        _
      $region72: #{residual_block_forward.7} parent=5 // pred_check_branch
        %226 = sbr.rel (%p223) target = $region74
      $region73: #{residual_block_forward.7} parent=5 // pred_region
        %s227 = ssub.s32 %s10, 1
        %s228 = sand.u32 %s23, 1
        %s229 = sand.u32 %s23, 1
        %s230 = smul.addr %s229, 32
        %s231 = scalar_lea.vmem [#allocation2], %s230
        // Predicated region
        $region75: #{residual_block_forward.7} parent=73 // pred_check
          %p232 = pneg %p36
        $region76: #{residual_block_forward.7} parent=73 // pred_check_branch
          %234 = sbr.rel (%p232) target = $region78
        $region77: #{residual_block_forward.7} parent=73 // pred_region
          _
        $region78: #{residual_block_forward.7} parent=73 // pred_fallthru
          _
        %s235 = sand.u32 %s49, 1
        %s236 = sand.u32 %s49, 1
        %s237 = smul.addr %s236, 32
        %s238 = scalar_lea.vmem [#allocation3], %s237
        // Predicated region
        $region79: #{residual_block_forward.7} parent=73 // pred_check
          %p239 = pneg %p62
        $region80: #{residual_block_forward.7} parent=73 // pred_check_branch
          %241 = sbr.rel (%p239) target = $region82
        $region81: #{residual_block_forward.7} parent=73 // pred_region
          _
        $region82: #{residual_block_forward.7} parent=73 // pred_fallthru
          _
        %s242 = sand.u32 %s23, 1
        %s243 = sand.u32 %s23, 1
        %s244 = smul.addr %s243, 32
        %s245 = scalar_lea.vmem [#allocation2], %s244
        %p246 = pneg %p36
        %p247 = pneg %p33
        %s248 = sand.u32 %s49, 1
        %s249 = sand.u32 %s49, 1
        %s250 = smul.addr %s249, 32
        %s251 = scalar_lea.vmem [#allocation3], %s250
        %p252 = pneg %p62
        %p253 = pneg %p59
        %p254 = pneg %p83
        %p255 = pneg %p80
        %p256 = pneg %p104
        %p257 = pneg %p101
        %p258 = pneg %p130
        %p259 = pneg %p127
        %s260 = sand.u32 %s117, 1
        %s261 = sand.u32 %s117, 1
        %s262 = smul.addr %s261, 32
        %s263 = scalar_lea.vmem [#allocation4], %s262
        %s264 = smul.u32 2, %s15
        %s265 = smul.u32 2, %s15
        %s266 = smul.u32 2, %s15
        %v267 = vld [vmem:[%s2] sm:$0xff]
        %v268 = vld [vmem:[%s2 + $0x8] sm:$0xff]
        %v269 = vld [vmem:[%s231] sm:$0xff]
        %v270 = vld [vmem:[%s231 + $0x8] sm:$0xff]
        %v271 = vld [vmem:[%s231 + $0x10] sm:$0xff]
        %v272 = vld [vmem:[%s231 + $0x18] sm:$0xff]
        %274 = vset.pattern.permute.xlu0 0
        %275 = vperm.xlu0 %274, %v267
        %v276 = vpop.permute.xlu0 %275
        %279 = vset.pattern.permute.xlu0 0
        %280 = vperm.xlu0 %279, %v268
        %v281 = vpop.permute.xlu0 %280
        %v283 = vmul.f32 %v276, %v269
        %v284 = vmul.f32 %v276, %v270
        %v285 = vmul.f32 %v281, %v271
        %v286 = vmul.f32 %v281, %v272
        %v287 = vld [vmem:[%s3] sm:$0xff]
        %v288 = vld [vmem:[%s3 + $0x8] sm:$0xff]
        %290 = vset.pattern.permute.xlu0 0
        %291 = vperm.xlu0 %290, %v287
        %v292 = vpop.permute.xlu0 %291
        %295 = vset.pattern.permute.xlu0 0
        %296 = vperm.xlu0 %295, %v288
        %v297 = vpop.permute.xlu0 %296
        %v299 = vadd.f32 %v283, %v292
        %v300 = vadd.f32 %v284, %v292
        %v301 = vadd.f32 %v285, %v297
        %v302 = vadd.f32 %v286, %v297
        %v303 = vld [vmem:[%s238] sm:$0xff]
        %v304 = vld [vmem:[%s238 + $0x8] sm:$0xff]
        %v305 = vld [vmem:[%s238 + $0x10] sm:$0xff]
        %v306 = vld [vmem:[%s238 + $0x18] sm:$0xff]
        %v307 = vadd.f32 %v299, %v303
        %v308 = vadd.f32 %v300, %v304
        %v309 = vadd.f32 %v301, %v305
        %v310 = vadd.f32 %v302, %v306
        %v311 = vmax.f32 %v307, 0.0
        %v312 = vmax.f32 %v308, 0.0
        %v313 = vmax.f32 %v309, 0.0
        %v314 = vmax.f32 %v310, 0.0
        %315 = vst [vmem:[%s263] sm:$0xff] %v311
        %316 = vst [vmem:[%s263 + $0x8] sm:$0xff] %v312
        %317 = vst [vmem:[%s263 + $0x10] sm:$0xff] %v313
        %318 = vst [vmem:[%s263 + $0x18] sm:$0xff] %v314
        %s319 = sand.u32 %s117, 1
        %s320 = sand.u32 %s117, 1
        %s321 = smul.addr %s320, 32
        %s322 = scalar_lea.vmem [#allocation4], %s321
        // Predicated region
        $region83: #{residual_block_forward.7} parent=73 // pred_check
          %p323 = pneg %p127
        $region84: #{residual_block_forward.7} parent=73 // pred_check_branch
          %325 = sbr.rel (%p323) target = $region86
        $region85: #{residual_block_forward.7} parent=73 // pred_region
          %s326 = smul.u32 2, %s15
          %s327 = smul.addr %s326, 8
          %s328 = scalar_lea.vmem %s4, %s327
          // Predicated region
          $region87: #{residual_block_forward.7} parent=85 // pred_check
            _
          $region88: #{residual_block_forward.7} parent=85 // pred_check_branch
            %330 = sbr.rel (0) target = $region90
          $region89: #{residual_block_forward.7} parent=85 // pred_region
            // Predicated region
            $region91: #{residual_block_forward.7} parent=89 // pred_check
              _
            $region92: #{residual_block_forward.7} parent=89 // pred_check_branch
              %332 = sbr.rel (0) target = $region94
            $region93: #{residual_block_forward.7} parent=89 // pred_region
              loop: start=0, step=1, limit=1
              $region95: #{residual_block_forward.7} parent=93 // loop_pre_header
                _
              $region96: #{residual_block_forward.7} parent=93 // loop_header
                %s334 = sphi 0, %s338
                %p335 = scmp.ge.s32.totalorder %s334, 1
                %s339 = sphi %s322, %s322
                %s340 = sphi %s328, %s328
              $region97: #{residual_block_forward.7} parent=93 // loop_header_branch
                %337 = sbr.rel (%p335) target = $region101
              $region98: #{residual_block_forward.7} parent=93 // loop_body
                %v341 = vld [vmem:[%s339] sm:$0xff]
                %342 = vst [vmem:[%s340] sm:$0xff] %v341
                %v343 = vld [vmem:[%s339 + $0x8] sm:$0xff]
                %344 = vst [vmem:[%s340 + $0x8] sm:$0xff] %v343
                %v345 = vld [vmem:[%s339 + $0x10] sm:$0xff]
                %346 = vst [vmem:[%s340 + $0x20] sm:$0xff] %v345
                %v347 = vld [vmem:[%s339 + $0x18] sm:$0xff]
                %348 = vst [vmem:[%s340 + $0x28] sm:$0xff] %v347
              $region99: #{residual_block_forward.7} parent=93 // loop_footer
                %s338 = sadd.s32 1, %s334
              $region100: #{residual_block_forward.7} parent=93 // loop_footer_branch
                %333 = sbr.rel target = $region96
              $region101: #{residual_block_forward.7} parent=93 // loop_exit
                _
            $region94: #{residual_block_forward.7} parent=89 // pred_fallthru
              _
            // Predicated region
            $region102: #{residual_block_forward.7} parent=89 // pred_check
              _
            $region103: #{residual_block_forward.7} parent=89 // pred_check_branch
              %350 = sbr.rel target = $region105
            $region104: #{residual_block_forward.7} parent=89 // pred_region
              _
            $region105: #{residual_block_forward.7} parent=89 // pred_fallthru
              _
          $region90: #{residual_block_forward.7} parent=85 // pred_fallthru
            _
          %351 = vnop
        $region86: #{residual_block_forward.7} parent=73 // pred_fallthru
          _
      $region74: #{residual_block_forward.7} parent=5 // pred_fallthru
        _
      %p352 = scmp.le.s32.totalorder 2, %s10
      // Predicated region
      $region106: #{residual_block_forward.7} parent=5 // pred_check
        %p353 = pneg %p352
      $region107: #{residual_block_forward.7} parent=5 // pred_check_branch
        %355 = sbr.rel (%p353) target = $region109
      $region108: #{residual_block_forward.7} parent=5 // pred_region
        %s356 = ssub.s32 %s10, 2
        // Predicated region
        $region110: #{residual_block_forward.7} parent=108 // pred_check
          %p357 = pneg %p133
        $region111: #{residual_block_forward.7} parent=108 // pred_check_branch
          %359 = sbr.rel (%p357) target = $region113
        $region112: #{residual_block_forward.7} parent=108 // pred_region
          %s360 = sand.u32 %s118, 1
          %s361 = sand.u32 %s118, 1
          %s362 = smul.addr %s361, 32
          %s363 = scalar_lea.vmem [#allocation4], %s362
        $region113: #{residual_block_forward.7} parent=108 // pred_fallthru
          _
      $region109: #{residual_block_forward.7} parent=5 // pred_fallthru
        _
    $region6: #{residual_block_forward.7} parent=1 // loop_footer
      %s14 = sadd.s32 1, %s10
    $region7: #{residual_block_forward.7} parent=1 // loop_footer_branch
      %9 = sbr.rel target = $region3
    $region8: #{residual_block_forward.7} parent=1 // loop_exit
      _

</llo_original>
